<compile_context>
chip_gen: v5e
topology: v5e:2x2
jax: 0.10.0
libtpu: 0.0.40
codegen_flags: <defaults>
</compile_context>

<pallas_src>
import jax
import jax.numpy as jnp
from jax.experimental import pallas as pl
from jax.experimental.pallas import tpu as pltpu

IMG_FEATURES = 28 * 28        # 784
NUM_CLASSES = 10
H1, H2 = 512, 256


def _discriminator_kernel(x_ref, c_ref, w1x_ref, w1c_ref, b1_ref,
                          w2_ref, b2_ref, w3_ref, b3_ref, out_ref):
    # Layer 1: Linear(794 -> 512) split as x@W1x + c@W1c (no HBM concat).
    # bf16 MXU operands (cast is a no-op if the caller already feeds bf16
    # images), f32 accumulation, f32 elementwise epilogue.
    h1 = jnp.dot(x_ref[...].astype(jnp.bfloat16), w1x_ref[...],
                 preferred_element_type=jnp.float32)
    h1 = h1 + jnp.dot(c_ref[...].astype(jnp.bfloat16), w1c_ref[...],
                      preferred_element_type=jnp.float32)
    h1 = h1 + b1_ref[...]
    h1 = jnp.maximum(h1, 0.2 * h1)                    # LeakyReLU(0.2), 1 VALU op

    # Layer 2: Linear(512 -> 256) + LeakyReLU(0.2)
    h2 = jnp.dot(h1.astype(jnp.bfloat16), w2_ref[...],
                 preferred_element_type=jnp.float32)
    h2 = h2 + b2_ref[...]
    h2 = jnp.maximum(h2, 0.2 * h2)

    # Layer 3: Linear(256 -> 1) as VPU multiply + XLU lane reduction
    # (instead of an N=1 MXU matmul with a single valid output lane).
    h3 = jnp.sum(h2 * w3_ref[...], axis=-1, keepdims=True) + b3_ref[...]
    out_ref[...] = jax.nn.sigmoid(h3)                 # EUP, f32
    # (Lane-dense (1, tb) store intentionally skipped: output is <0.2% of HBM
    #  traffic and the kernel is x-DMA-bound; see header note.)


def _round_up(n, m):
    return ((n + m - 1) // m) * m


def _num_tensorcores_per_device():
    """Best-effort TensorCore count per device (2 on v7x-style chips).

    Falls back to 1 (previous behaviour) if the info isn't exposed; clamped to
    2 so a surprising value can't shred the batch tile.
    """
    n = 1
    try:
        info = pltpu.get_tpu_info()
        for attr in ("num_cores", "num_tensorcores", "core_count"):
            v = getattr(info, attr, None)
            if isinstance(v, int) and v > 0:
                n = max(n, v)
    except Exception:
        pass
    try:
        v = getattr(jax.devices()[0], "num_cores", None)
        if isinstance(v, int) and v > 0:
            n = max(n, v)
    except Exception:
        pass
    return min(n, 2)


def init_params(key):
    """nn.Linear-default init: U(-1/sqrt(in), 1/sqrt(in)); W as (in, out)."""
    dims = [(IMG_FEATURES + NUM_CLASSES, H1), (H1, H2), (H2, 1)]
    params = []
    for (fan_in, fan_out) in dims:
        key, kw, kb = jax.random.split(key, 3)
        bound = 1.0 / jnp.sqrt(float(fan_in))
        w = jax.random.uniform(kw, (fan_in, fan_out), jnp.float32, -bound, bound)
        b = jax.random.uniform(kb, (1, fan_out), jnp.float32, -bound, bound)
        params += [w, b]
    return tuple(params)


def prepare_params(params):
    """One-time conversion to the kernel layout (do NOT repeat per call).

    Splits W1 into image/class halves (so x and c never get concatenated in
    HBM), stores matmul weights in bf16, keeps biases and the final 256-wide
    W3 row in f32 (layer 3 runs on the VPU/XLU in f32).
    """
    w1, b1, w2, b2, w3, b3 = params
    w1x = w1[:IMG_FEATURES].astype(jnp.bfloat16)      # (784, 512)
    w1c = w1[IMG_FEATURES:].astype(jnp.bfloat16)      # (10, 512)
    w3_row = w3.reshape(1, H2).astype(jnp.float32)    # (1, 256)
    b3_s = b3.reshape(1, 1).astype(jnp.float32)       # (1, 1)
    return (w1x, w1c, b1.astype(jnp.float32),
            w2.astype(jnp.bfloat16), b2.astype(jnp.float32),
            w3_row, b3_s)


def discriminator_forward(x, c, kparams, *, tile_b=512):
    """x: (B, 1, 28, 28) f32 or bf16, c: (B, 10) float -> validity (B, 1) f32.

    Caller contract (perf): x is ~98% of streamed HBM bytes.  If the upstream
    producer can emit bf16 images, pass them directly — the in-kernel cast
    becomes a no-op and the dominant HBM stream halves.  Do not cast in a
    standalone wrapper op (that would add a full extra HBM pass over x).
    """
    B = x.shape[0]
    xf = x.reshape(B, IMG_FEATURES)                   # free metadata reshape
    if not jnp.issubdtype(c.dtype, jnp.floating):
        c = c.astype(jnp.float32)

    w1x, w1c, b1, w2, b2, w3_row, b3 = kparams

    # ---- Batch tile / grid selection (no padding, no extra HBM pass) ----
    # * multiple of 8 sublanes (or == B when a single tile covers the batch)
    # * >= num_tensorcores grid steps so v7x megacore sharding has work
    # * capped at tile_b (default 512; 1024 max) to stay inside scoped VMEM
    tile_b = max(8, min(int(tile_b), 1024))
    ncores = _num_tensorcores_per_device()
    n_tiles = max(ncores, pl.cdiv(B, tile_b))
    tb = _round_up(pl.cdiv(B, n_tiles), 8)
    if tb >= B:
        tb = B                                        # one full-batch tile
    grid = (pl.cdiv(B, tb),)                          # ragged last tile is OK:
                                                      # Pallas masks the boundary block

    def row_spec(k):                                  # batch-tiled activations
        return pl.BlockSpec((tb, k), lambda i: (i, 0))

    def resident(shape):                              # VMEM-resident across steps
        return pl.BlockSpec(shape, lambda i: (0,) * len(shape))

    cp_kwargs = dict(dimension_semantics=("parallel",))   # megacore on v7x
    if tb > 512:
        # tb in (512, 1024]: ~13 MiB working set; raise v5e's 16 MiB scoped
        # default so the same tile works on every generation.
        cp_kwargs["vmem_limit_bytes"] = 32 * 1024 * 1024

    out = pl.pallas_call(
        _discriminator_kernel,
        out_shape=jax.ShapeDtypeStruct((B, 1), jnp.float32),
        grid=grid,
        in_specs=[
            row_spec(IMG_FEATURES),                   # x   (tb, 784) f32/bf16
            row_spec(NUM_CLASSES),                    # c   (tb, 10)  float
            resident(w1x.shape),                      # (784, 512) bf16
            resident(w1c.shape),                      # (10, 512)  bf16
            resident(b1.shape),                       # (1, 512)   f32
            resident(w2.shape),                       # (512, 256) bf16
            resident(b2.shape),                       # (1, 256)   f32
            resident(w3_row.shape),                   # (1, 256)   f32
            resident(b3.shape),                       # (1, 1)     f32
        ],
        out_specs=pl.BlockSpec((tb, 1), lambda i: (i, 0)),
        compiler_params=pltpu.CompilerParams(**cp_kwargs),
    )(xf, c, w1x, w1c, b1, w2, b2, w3_row, b3)

    return out                                        # already exactly (B, 1)


if __name__ == "__main__":
    key = jax.random.PRNGKey(0)
    k_params, k_x, k_c = jax.random.split(key, 3)

    params = init_params(k_params)        # f32, PyTorch-equivalent layout
    kparams = prepare_params(params)      # split W1, bf16 matmul weights

    B = 8
    x = jax.random.normal(k_x, (B, 1, 28, 28), dtype=jnp.float32)
    labels = jax.random.randint(k_c, (B,), 0, 10)
    c = jax.nn.one_hot(labels, 10, dtype=jnp.float32)

    validity = discriminator_forward(x, c, kparams)
    jax.block_until_ready(validity)

    assert validity.shape == (B, 1)
    assert validity.dtype == jnp.float32
    assert bool(jnp.all((validity >= 0.0) & (validity <= 1.0)))

    # Plain-JAX f32 reference of the same math. bf16 matmul operands loosen
    # the tolerance vs. a pure-f32 kernel.
    w1, b1, w2, b2, w3, b3 = params
    xc = jnp.concatenate([x.reshape(B, -1), c], axis=-1)
    h1 = xc @ w1 + b1
    h1 = jnp.where(h1 >= 0, h1, 0.2 * h1)
    h2 = h1 @ w2 + b2
    h2 = jnp.where(h2 >= 0, h2, 0.2 * h2)
    ref = jax.nn.sigmoid(h2 @ w3 + b3)
    assert bool(jnp.allclose(validity, ref, atol=2e-2, rtol=2e-2)), (
        float(jnp.max(jnp.abs(validity - ref))))

    print("KERNEL_OK")
</pallas_src>

<mosaic_0001>
module attributes {stable_mosaic.version = 11 : i64} {
  func.func @_discriminator_kernel(%arg0: i32, %arg1: memref<8x784xf32, #tpu.memory_space<vmem>>, %arg2: memref<8x10xf32, #tpu.memory_space<vmem>>, %arg3: memref<784x512xbf16, #tpu.memory_space<vmem>>, %arg4: memref<10x512xbf16, #tpu.memory_space<vmem>>, %arg5: memref<1x512xf32, #tpu.memory_space<vmem>>, %arg6: memref<512x256xbf16, #tpu.memory_space<vmem>>, %arg7: memref<1x256xf32, #tpu.memory_space<vmem>>, %arg8: memref<1x256xf32, #tpu.memory_space<vmem>>, %arg9: memref<1x1xf32, #tpu.memory_space<vmem>>, %arg10: memref<8x1xf32, #tpu.memory_space<vmem>>) attributes {dimension_semantics = [#tpu.dimension_semantics<parallel>], iteration_bounds = array<i64: 1>, scalar_prefetch = 0 : i64, scratch_operands = 0 : i64, tpu.core_type = #tpu.core_type<tc>, window_params = [{transform_indices = @transform_0, window_bounds = array<i64: 8, 784>}, {transform_indices = @transform_1, window_bounds = array<i64: 8, 10>}, {pipeline_mode = #tpu.pipeline_mode<synchronous>, transform_indices = @transform_2, window_bounds = array<i64: 784, 512>}, {pipeline_mode = #tpu.pipeline_mode<synchronous>, transform_indices = @transform_3, window_bounds = array<i64: 10, 512>}, {pipeline_mode = #tpu.pipeline_mode<synchronous>, transform_indices = @transform_4, window_bounds = array<i64: 1, 512>}, {pipeline_mode = #tpu.pipeline_mode<synchronous>, transform_indices = @transform_5, window_bounds = array<i64: 512, 256>}, {pipeline_mode = #tpu.pipeline_mode<synchronous>, transform_indices = @transform_6, window_bounds = array<i64: 1, 256>}, {pipeline_mode = #tpu.pipeline_mode<synchronous>, transform_indices = @transform_7, window_bounds = array<i64: 1, 256>}, {pipeline_mode = #tpu.pipeline_mode<synchronous>, transform_indices = @transform_8, window_bounds = array<i64: 1, 1>}, {transform_indices = @transform_9, window_bounds = array<i64: 8, 1>}]} {
    %c0 = arith.constant 0 : index
    %c0_0 = arith.constant 0 : index
    %0 = vector.load %arg1[%c0, %c0_0] : memref<8x784xf32, #tpu.memory_space<vmem>>, vector<8x784xf32>
    %1 = arith.truncf %0 : vector<8x784xf32> to vector<8x784xbf16>
    %c0_1 = arith.constant 0 : index
    %c0_2 = arith.constant 0 : index
    %2 = vector.load %arg3[%c0_1, %c0_2] : memref<784x512xbf16, #tpu.memory_space<vmem>>, vector<784x512xbf16>
    %cst = arith.constant dense<0.000000e+00> : vector<8x512xf32>
    %3 = tpu.matmul %1, %2, %cst {dimension_numbers = #tpu.dot_dimension_numbers<[1], [0], [0], [1], [0, 0, 1, 1], [], []>} : vector<8x784xbf16>, vector<784x512xbf16>, vector<8x512xf32> -> vector<8x512xf32>
    %c0_3 = arith.constant 0 : index
    %c0_4 = arith.constant 0 : index
    %4 = vector.load %arg2[%c0_3, %c0_4] : memref<8x10xf32, #tpu.memory_space<vmem>>, vector<8x10xf32>
    %5 = arith.truncf %4 : vector<8x10xf32> to vector<8x10xbf16>
    %c0_5 = arith.constant 0 : index
    %c0_6 = arith.constant 0 : index
    %6 = vector.load %arg4[%c0_5, %c0_6] : memref<10x512xbf16, #tpu.memory_space<vmem>>, vector<10x512xbf16>
    %cst_7 = arith.constant dense<0.000000e+00> : vector<8x512xf32>
    %7 = tpu.matmul %5, %6, %cst_7 {dimension_numbers = #tpu.dot_dimension_numbers<[1], [0], [0], [1], [0, 0, 1, 1], [], []>} : vector<8x10xbf16>, vector<10x512xbf16>, vector<8x512xf32> -> vector<8x512xf32>
    %8 = arith.addf %3, %7 : vector<8x512xf32>
    %c0_8 = arith.constant 0 : index
    %c0_9 = arith.constant 0 : index
    %9 = vector.load %arg5[%c0_8, %c0_9] : memref<1x512xf32, #tpu.memory_space<vmem>>, vector<1x512xf32>
    %10 = vector.broadcast %9 : vector<1x512xf32> to vector<8x512xf32>
    %11 = arith.addf %8, %10 : vector<8x512xf32>
    %cst_10 = arith.constant 2.000000e-01 : f32
    %12 = vector.broadcast %cst_10 : f32 to vector<8x512xf32>
    %13 = arith.mulf %12, %11 : vector<8x512xf32>
    %14 = arith.maximumf %11, %13 : vector<8x512xf32>
    %15 = arith.truncf %14 : vector<8x512xf32> to vector<8x512xbf16>
    %c0_11 = arith.constant 0 : index
    %c0_12 = arith.constant 0 : index
    %16 = vector.load %arg6[%c0_11, %c0_12] : memref<512x256xbf16, #tpu.memory_space<vmem>>, vector<512x256xbf16>
    %cst_13 = arith.constant dense<0.000000e+00> : vector<8x256xf32>
    %17 = tpu.matmul %15, %16, %cst_13 {dimension_numbers = #tpu.dot_dimension_numbers<[1], [0], [0], [1], [0, 0, 1, 1], [], []>} : vector<8x512xbf16>, vector<512x256xbf16>, vector<8x256xf32> -> vector<8x256xf32>
    %c0_14 = arith.constant 0 : index
    %c0_15 = arith.constant 0 : index
    %18 = vector.load %arg7[%c0_14, %c0_15] : memref<1x256xf32, #tpu.memory_space<vmem>>, vector<1x256xf32>
    %19 = vector.broadcast %18 : vector<1x256xf32> to vector<8x256xf32>
    %20 = arith.addf %17, %19 : vector<8x256xf32>
    %cst_16 = arith.constant 2.000000e-01 : f32
    %21 = vector.broadcast %cst_16 : f32 to vector<8x256xf32>
    %22 = arith.mulf %21, %20 : vector<8x256xf32>
    %23 = arith.maximumf %20, %22 : vector<8x256xf32>
    %c0_17 = arith.constant 0 : index
    %c0_18 = arith.constant 0 : index
    %24 = vector.load %arg8[%c0_17, %c0_18] : memref<1x256xf32, #tpu.memory_space<vmem>>, vector<1x256xf32>
    %25 = vector.broadcast %24 : vector<1x256xf32> to vector<8x256xf32>
    %26 = arith.mulf %23, %25 : vector<8x256xf32>
    %cst_19 = arith.constant dense<0.000000e+00> : vector<8xf32>
    %27 = vector.multi_reduction <add>, %26, %cst_19 [1] : vector<8x256xf32> to vector<8xf32>
    %28 = vector.shape_cast %27 : vector<8xf32> to vector<8x1xf32>
    %c0_20 = arith.constant 0 : index
    %c0_21 = arith.constant 0 : index
    %29 = vector.load %arg9[%c0_20, %c0_21] : memref<1x1xf32, #tpu.memory_space<vmem>>, vector<1x1xf32>
    %30 = vector.broadcast %29 : vector<1x1xf32> to vector<8x1xf32>
    %31 = arith.addf %28, %30 : vector<8x1xf32>
    %32 = arith.negf %31 : vector<8x1xf32>
    %33 = math.exp %32 : vector<8x1xf32>
    %cst_22 = arith.constant 1.000000e+00 : f32
    %34 = vector.broadcast %cst_22 : f32 to vector<8x1xf32>
    %35 = arith.addf %34, %33 : vector<8x1xf32>
    %36 = arith.divf %34, %35 : vector<8x1xf32>
    %c0_23 = arith.constant 0 : index
    %c0_24 = arith.constant 0 : index
    %37 = vector.load %arg10[%c0_23, %c0_24] : memref<8x1xf32, #tpu.memory_space<vmem>>, vector<8x1xf32>
    tpu.vector_store %arg10[%c0_23, %c0_24], %36 {strides = array<i32>} : memref<8x1xf32, #tpu.memory_space<vmem>>, vector<8x1xf32>,
    return
  }
  func.func @transform_0(%arg0: i32) -> (i32, i32) {
    %c0_i32 = arith.constant 0 : i32
    %c0_i32_0 = arith.constant 0 : i32
    return %arg0, %c0_i32 : i32, i32
  }
  func.func @transform_1(%arg0: i32) -> (i32, i32) {
    %c0_i32 = arith.constant 0 : i32
    %c0_i32_0 = arith.constant 0 : i32
    return %arg0, %c0_i32 : i32, i32
  }
  func.func @transform_2(%arg0: i32) -> (i32, i32) {
    %c0_i32 = arith.constant 0 : i32
    %c0_i32_0 = arith.constant 0 : i32
    %c0_i32_1 = arith.constant 0 : i32
    return %c0_i32, %c0_i32_0 : i32, i32
  }
  func.func @transform_3(%arg0: i32) -> (i32, i32) {
    %c0_i32 = arith.constant 0 : i32
    %c0_i32_0 = arith.constant 0 : i32
    %c0_i32_1 = arith.constant 0 : i32
    return %c0_i32, %c0_i32_0 : i32, i32
  }
  func.func @transform_4(%arg0: i32) -> (i32, i32) {
    %c0_i32 = arith.constant 0 : i32
    %c0_i32_0 = arith.constant 0 : i32
    %c0_i32_1 = arith.constant 0 : i32
    return %c0_i32, %c0_i32_0 : i32, i32
  }
  func.func @transform_5(%arg0: i32) -> (i32, i32) {
    %c0_i32 = arith.constant 0 : i32
    %c0_i32_0 = arith.constant 0 : i32
    %c0_i32_1 = arith.constant 0 : i32
    return %c0_i32, %c0_i32_0 : i32, i32
  }
  func.func @transform_6(%arg0: i32) -> (i32, i32) {
    %c0_i32 = arith.constant 0 : i32
    %c0_i32_0 = arith.constant 0 : i32
    %c0_i32_1 = arith.constant 0 : i32
    return %c0_i32, %c0_i32_0 : i32, i32
  }
  func.func @transform_7(%arg0: i32) -> (i32, i32) {
    %c0_i32 = arith.constant 0 : i32
    %c0_i32_0 = arith.constant 0 : i32
    %c0_i32_1 = arith.constant 0 : i32
    return %c0_i32, %c0_i32_0 : i32, i32
  }
  func.func @transform_8(%arg0: i32) -> (i32, i32) {
    %c0_i32 = arith.constant 0 : i32
    %c0_i32_0 = arith.constant 0 : i32
    %c0_i32_1 = arith.constant 0 : i32
    return %c0_i32, %c0_i32_0 : i32, i32
  }
  func.func @transform_9(%arg0: i32) -> (i32, i32) {
    %c0_i32 = arith.constant 0 : i32
    %c0_i32_0 = arith.constant 0 : i32
    return %arg0, %c0_i32 : i32, i32
  }
}

</mosaic_0001>

<llo_original>
// kernel: tpu_custom_call.1
$region0: #{tpu_custom_call.1}
  #allocation0 [shape = 'u32[]', space=smem, size = 0x4, offset = 0x4, fixed_abs, tag = 'smem constant byte address 0x4 - core index']
  #allocation1 [shape = 'u32[72,128]{1,0:T(1,128)}', space=vmem, size = 0x9000, scoped, tag = 'internal scratch']
  #allocation2 [shape = 'f32[1,1]{1,0:T(1,128)S(1)}', space=vmem, size = 0x200, scoped, tag = 'scoped memory for tpu_custom_call.1']
  %s0 = inlined_call_operand.hbm [shape: f32[8,784], index: 0, kind: input, shape index: {}]
  %s1 = inlined_call_operand.hbm [shape: f32[8,10], index: 1, kind: input, shape index: {}]
  %s2 = inlined_call_operand.hbm [shape: bf16[784,512], index: 2, kind: input, shape index: {}]
  %s3 = inlined_call_operand.hbm [shape: bf16[10,512], index: 3, kind: input, shape index: {}]
  %s4 = inlined_call_operand.vmem [shape: f32[1,512], index: 4, kind: input, shape index: {}]
  %s5 = inlined_call_operand.hbm [shape: bf16[512,256], index: 5, kind: input, shape index: {}]
  %s6 = inlined_call_operand.vmem [shape: f32[1,256], index: 6, kind: input, shape index: {}]
  %s7 = inlined_call_operand.vmem [shape: f32[1,256], index: 7, kind: input, shape index: {}]
  %s8 = inlined_call_operand.<no memory space> [shape: f32[1,1], index: 8, kind: input, shape index: {}]
  %s9 = inlined_call_operand.vmem [shape: f32[8,1], index: 9, kind: output, shape index: {}]
  %s10 = sld [smem:[#allocation0]]
  $region66: #{tpu_custom_call.1} parent=0
    _
  %s12 = ssub.s32 1, %s10
  %s13 = scalar_select 0, %s12, %s10
  %v14 = vstv %s8
  %15 = vst [vmem:[#allocation2] sm:$0x1] %v14
  $region1: #{tpu_custom_call.1} parent=0
    #allocation3 [shape = 'u8[28672]{0}', space=vmem, size = 0x7000, scoped, tag = 'input window, operand 0, single buffered']
    #allocation4 [shape = 's32[1]{0}', space=sflag, size = 0x4, scoped, tag = 'scoped memory for tpu_custom_call.1']
    #allocation5 [shape = 'u8[4096]{0}', space=vmem, size = 0x1000, scoped, tag = 'input window, operand 1, single buffered']
    #allocation6 [shape = 's32[1]{0}', space=sflag, size = 0x4, scoped, tag = 'scoped memory for tpu_custom_call.1']
    #allocation7 [shape = 'u8[802816]{0}', space=vmem, size = 0xc4000, scoped, tag = 'input window, operand 2, single buffered']
    #allocation8 [shape = 'u8[16384]{0}', space=vmem, size = 0x4000, scoped, tag = 'input window, operand 3, single buffered']
    #allocation9 [shape = 's32[1]{0}', space=sflag, size = 0x4, scoped, tag = 'scoped memory for tpu_custom_call.1']
    #allocation10 [shape = 'u8[262144]{0}', space=vmem, size = 0x40000, scoped, tag = 'input window, operand 5, single buffered']
    %16 = vsyncpa [#allocation4], 0
    %17 = vsyncpa [#allocation6], 0
    %18 = vsyncpa [#allocation9], 0
    // Predicated region
    $region2: #{tpu_custom_call.1} parent=1 // pred_check
      _
    $region3: #{tpu_custom_call.1} parent=1 // pred_check_branch
      %20 = sbr.rel (0) target = $region5
    $region4: #{tpu_custom_call.1} parent=1 // pred_region
      %22 = vsyncadd [#allocation4], 0
      %s24 = sshll.u32 %s0, 4
      %s25 = int_to_ptr.hbm [resolvable:$true] %s24
      %s26 = sshll.u32 [#allocation3], 4
      %s27 = int_to_ptr.vmem [resolvable:$true] %s26
      %29 = dma.hbm_to_vmem [thread:$0]  %s25, 896, %s27, [#allocation4]
    $region5: #{tpu_custom_call.1} parent=1 // pred_fallthru
      _
    // Predicated region
    $region6: #{tpu_custom_call.1} parent=1 // pred_check
      _
    $region7: #{tpu_custom_call.1} parent=1 // pred_check_branch
      %31 = sbr.rel (0) target = $region9
    $region8: #{tpu_custom_call.1} parent=1 // pred_region
      %33 = vsyncadd [#allocation6], 0
      %s35 = sshll.u32 %s1, 4
      %s36 = int_to_ptr.hbm [resolvable:$true] %s35
      %s37 = sshll.u32 [#allocation5], 4
      %s38 = int_to_ptr.vmem [resolvable:$true] %s37
      %40 = dma.hbm_to_vmem [thread:$0]  %s36, 128, %s38, [#allocation6]
    $region9: #{tpu_custom_call.1} parent=1 // pred_fallthru
      _
    // Predicated region
    $region10: #{tpu_custom_call.1} parent=1 // pred_check
      _
    $region11: #{tpu_custom_call.1} parent=1 // pred_check_branch
      %42 = sbr.rel (0) target = $region13
    $region12: #{tpu_custom_call.1} parent=1 // pred_region
      %44 = vsyncadd [#allocation6], 0
      %s45 = sshll.u32 %s2, 4
      %s46 = int_to_ptr.hbm [resolvable:$true] %s45
      %s47 = sshll.u32 [#allocation7], 4
      %s48 = int_to_ptr.vmem [resolvable:$true] %s47
      %53 = dma.hbm_to_vmem [thread:$0]  %s46, 25088, %s48, [#allocation6], 256, 256, 16
    $region13: #{tpu_custom_call.1} parent=1 // pred_fallthru
      _
    // Predicated region
    $region14: #{tpu_custom_call.1} parent=1 // pred_check
      _
    $region15: #{tpu_custom_call.1} parent=1 // pred_check_branch
      %55 = sbr.rel (0) target = $region17
    $region16: #{tpu_custom_call.1} parent=1 // pred_region
      %57 = vsyncadd [#allocation9], 0
      %s58 = sshll.u32 %s3, 4
      %s59 = int_to_ptr.hbm [resolvable:$true] %s58
      %s60 = sshll.u32 [#allocation8], 4
      %s61 = int_to_ptr.vmem [resolvable:$true] %s60
      %66 = dma.hbm_to_vmem [thread:$0]  %s59, 512, %s61, [#allocation9], 256, 256, 16
    $region17: #{tpu_custom_call.1} parent=1 // pred_fallthru
      _
    // Predicated region
    $region18: #{tpu_custom_call.1} parent=1 // pred_check
      _
    $region19: #{tpu_custom_call.1} parent=1 // pred_check_branch
      %68 = sbr.rel (0) target = $region21
    $region20: #{tpu_custom_call.1} parent=1 // pred_region
      _
    $region21: #{tpu_custom_call.1} parent=1 // pred_fallthru
      _
    // Predicated region
    $region22: #{tpu_custom_call.1} parent=1 // pred_check
      _
    $region23: #{tpu_custom_call.1} parent=1 // pred_check_branch
      %70 = sbr.rel (0) target = $region25
    $region24: #{tpu_custom_call.1} parent=1 // pred_region
      %72 = vsyncadd [#allocation9], 0
      %s73 = sshll.u32 %s5, 4
      %s74 = int_to_ptr.hbm [resolvable:$true] %s73
      %s75 = sshll.u32 [#allocation10], 4
      %s76 = int_to_ptr.vmem [resolvable:$true] %s75
      %81 = dma.hbm_to_vmem [thread:$0]  %s74, 8192, %s76, [#allocation9], 128, 128, 8
    $region25: #{tpu_custom_call.1} parent=1 // pred_fallthru
      _
    // Predicated region
    $region26: #{tpu_custom_call.1} parent=1 // pred_check
      _
    $region27: #{tpu_custom_call.1} parent=1 // pred_check_branch
      %83 = sbr.rel (0) target = $region29
    $region28: #{tpu_custom_call.1} parent=1 // pred_region
      _
    $region29: #{tpu_custom_call.1} parent=1 // pred_fallthru
      _
    // Predicated region
    $region30: #{tpu_custom_call.1} parent=1 // pred_check
      _
    $region31: #{tpu_custom_call.1} parent=1 // pred_check_branch
      %85 = sbr.rel (0) target = $region33
    $region32: #{tpu_custom_call.1} parent=1 // pred_region
      _
    $region33: #{tpu_custom_call.1} parent=1 // pred_fallthru
      _
    // Predicated region
    $region34: #{tpu_custom_call.1} parent=1 // pred_check
      _
    $region35: #{tpu_custom_call.1} parent=1 // pred_check_branch
      %87 = sbr.rel (0) target = $region37
    $region36: #{tpu_custom_call.1} parent=1 // pred_region
      _
    $region37: #{tpu_custom_call.1} parent=1 // pred_fallthru
      _
    // Predicated region
    $region38: #{tpu_custom_call.1} parent=1 // pred_check
      _
    $region39: #{tpu_custom_call.1} parent=1 // pred_check_branch
      %89 = sbr.rel (0) target = $region41
    $region40: #{tpu_custom_call.1} parent=1 // pred_region
      %91 = dma.done [#allocation4], 896
    $region41: #{tpu_custom_call.1} parent=1 // pred_fallthru
      _
    // Predicated region
    $region42: #{tpu_custom_call.1} parent=1 // pred_check
      _
    $region43: #{tpu_custom_call.1} parent=1 // pred_check_branch
      %93 = sbr.rel (0) target = $region45
    $region44: #{tpu_custom_call.1} parent=1 // pred_region
      %95 = dma.done [#allocation6], 128
    $region45: #{tpu_custom_call.1} parent=1 // pred_fallthru
      _
    // Predicated region
    $region46: #{tpu_custom_call.1} parent=1 // pred_check
      _
    $region47: #{tpu_custom_call.1} parent=1 // pred_check_branch
      %97 = sbr.rel (0) target = $region49
    $region48: #{tpu_custom_call.1} parent=1 // pred_region
      %99 = dma.done [#allocation6], 25088
    $region49: #{tpu_custom_call.1} parent=1 // pred_fallthru
      _
    // Predicated region
    $region50: #{tpu_custom_call.1} parent=1 // pred_check
      _
    $region51: #{tpu_custom_call.1} parent=1 // pred_check_branch
      %101 = sbr.rel (0) target = $region53
    $region52: #{tpu_custom_call.1} parent=1 // pred_region
      %103 = dma.done [#allocation9], 512
    $region53: #{tpu_custom_call.1} parent=1 // pred_fallthru
      _
    // Predicated region
    $region54: #{tpu_custom_call.1} parent=1 // pred_check
      _
    $region55: #{tpu_custom_call.1} parent=1 // pred_check_branch
      %105 = sbr.rel (0) target = $region57
    $region56: #{tpu_custom_call.1} parent=1 // pred_region
      %107 = dma.done [#allocation9], 8192
    $region57: #{tpu_custom_call.1} parent=1 // pred_fallthru
      _
    %v109 = vld [vmem:[#allocation3] sm:$0xff]
    %v110 = vld [vmem:[#allocation3 + $0x8] sm:$0xff]
    %v111 = vld [vmem:[#allocation3 + $0x10] sm:$0xff]
    %v112 = vld [vmem:[#allocation3 + $0x18] sm:$0xff]
    %v113 = vld [vmem:[#allocation3 + $0x20] sm:$0xff]
    %v114 = vld [vmem:[#allocation3 + $0x28] sm:$0xff]
    %v115 = vld [vmem:[#allocation3 + $0x30] sm:$0xff]
    %v116 = vpack.c.bf16 %v109, %v109
    %v117 = vpack.c.bf16 %v110, %v110
    %v118 = vpack.c.bf16 %v111, %v111
    %v119 = vpack.c.bf16 %v112, %v112
    %v120 = vpack.c.bf16 %v113, %v113
    %v121 = vpack.c.bf16 %v114, %v114
    %v122 = vpack.c.bf16 %v115, %v115
    %v123 = vld [vmem:[#allocation7] sm:$0xff]
    %v124 = vld [vmem:[#allocation7 + $0x8] sm:$0xff]
    %v125 = vld [vmem:[#allocation7 + $0x10] sm:$0xff]
    %v126 = vld [vmem:[#allocation7 + $0x18] sm:$0xff]
    %v127 = vld [vmem:[#allocation7 + $0x20] sm:$0xff]
    %v128 = vld [vmem:[#allocation7 + $0x28] sm:$0xff]
    %v129 = vld [vmem:[#allocation7 + $0x30] sm:$0xff]
    %v130 = vld [vmem:[#allocation7 + $0x38] sm:$0xff]
    %v131 = vld [vmem:[#allocation7 + $0x40] sm:$0xff]
    %v132 = vld [vmem:[#allocation7 + $0x48] sm:$0xff]
    %v133 = vld [vmem:[#allocation7 + $0x50] sm:$0xff]
    %v134 = vld [vmem:[#allocation7 + $0x58] sm:$0xff]
    %v135 = vld [vmem:[#allocation7 + $0x60] sm:$0xff]
    %v136 = vld [vmem:[#allocation7 + $0x68] sm:$0xff]
    %v137 = vld [vmem:[#allocation7 + $0x70] sm:$0xff]
    %v138 = vld [vmem:[#allocation7 + $0x78] sm:$0xff]
    %v139 = vld [vmem:[#allocation7 + $0x80] sm:$0xff]
    %v140 = vld [vmem:[#allocation7 + $0x88] sm:$0xff]
    %v141 = vld [vmem:[#allocation7 + $0x90] sm:$0xff]
    %v142 = vld [vmem:[#allocation7 + $0x98] sm:$0xff]
    %v143 = vld [vmem:[#allocation7 + $0xa0] sm:$0xff]
    %v144 = vld [vmem:[#allocation7 + $0xa8] sm:$0xff]
    %v145 = vld [vmem:[#allocation7 + $0xb0] sm:$0xff]
    %v146 = vld [vmem:[#allocation7 + $0xb8] sm:$0xff]
    %v147 = vld [vmem:[#allocation7 + $0xc0] sm:$0xff]
    %v148 = vld [vmem:[#allocation7 + $0xc8] sm:$0xff]
    %v149 = vld [vmem:[#allocation7 + $0xd0] sm:$0xff]
    %v150 = vld [vmem:[#allocation7 + $0xd8] sm:$0xff]
    %v151 = vld [vmem:[#allocation7 + $0xe0] sm:$0xff]
    %v152 = vld [vmem:[#allocation7 + $0xe8] sm:$0xff]
    %v153 = vld [vmem:[#allocation7 + $0xf0] sm:$0xff]
    %v154 = vld [vmem:[#allocation7 + $0xf8] sm:$0xff]
    %v155 = vld [vmem:[#allocation7 + $0x100] sm:$0xff]
    %v156 = vld [vmem:[#allocation7 + $0x108] sm:$0xff]
    %v157 = vld [vmem:[#allocation7 + $0x110] sm:$0xff]
    %v158 = vld [vmem:[#allocation7 + $0x118] sm:$0xff]
    %v159 = vld [vmem:[#allocation7 + $0x120] sm:$0xff]
    %v160 = vld [vmem:[#allocation7 + $0x128] sm:$0xff]
    %v161 = vld [vmem:[#allocation7 + $0x130] sm:$0xff]
    %v162 = vld [vmem:[#allocation7 + $0x138] sm:$0xff]
    %v163 = vld [vmem:[#allocation7 + $0x140] sm:$0xff]
    %v164 = vld [vmem:[#allocation7 + $0x148] sm:$0xff]
    %v165 = vld [vmem:[#allocation7 + $0x150] sm:$0xff]
    %v166 = vld [vmem:[#allocation7 + $0x158] sm:$0xff]
    %v167 = vld [vmem:[#allocation7 + $0x160] sm:$0xff]
    %v168 = vld [vmem:[#allocation7 + $0x168] sm:$0xff]
    %v169 = vld [vmem:[#allocation7 + $0x170] sm:$0xff]
    %v170 = vld [vmem:[#allocation7 + $0x178] sm:$0xff]
    %v171 = vld [vmem:[#allocation7 + $0x180] sm:$0xff]
    %v172 = vld [vmem:[#allocation7 + $0x188] sm:$0xff]
    %v173 = vld [vmem:[#allocation7 + $0x190] sm:$0xff]
    %v174 = vld [vmem:[#allocation7 + $0x198] sm:$0xff]
    %v175 = vld [vmem:[#allocation7 + $0x1a0] sm:$0xff]
    %v176 = vld [vmem:[#allocation7 + $0x1a8] sm:$0xff]
    %v177 = vld [vmem:[#allocation7 + $0x1b0] sm:$0xff]
    %v178 = vld [vmem:[#allocation7 + $0x1b8] sm:$0xff]
    %v179 = vld [vmem:[#allocation7 + $0x1c0] sm:$0xff]
    %v180 = vld [vmem:[#allocation7 + $0x1c8] sm:$0xff]
    %v181 = vld [vmem:[#allocation7 + $0x1d0] sm:$0xff]
    %v182 = vld [vmem:[#allocation7 + $0x1d8] sm:$0xff]
    %v183 = vld [vmem:[#allocation7 + $0x1e0] sm:$0xff]
    %v184 = vld [vmem:[#allocation7 + $0x1e8] sm:$0xff]
    %v185 = vld [vmem:[#allocation7 + $0x1f0] sm:$0xff]
    %v186 = vld [vmem:[#allocation7 + $0x1f8] sm:$0xff]
    %v187 = vld [vmem:[#allocation7 + $0x200] sm:$0xff]
    %v188 = vld [vmem:[#allocation7 + $0x208] sm:$0xff]
    %v189 = vld [vmem:[#allocation7 + $0x210] sm:$0xff]
    %v190 = vld [vmem:[#allocation7 + $0x218] sm:$0xff]
    %v191 = vld [vmem:[#allocation7 + $0x220] sm:$0xff]
    %v192 = vld [vmem:[#allocation7 + $0x228] sm:$0xff]
    %v193 = vld [vmem:[#allocation7 + $0x230] sm:$0xff]
    %v194 = vld [vmem:[#allocation7 + $0x238] sm:$0xff]
    %v195 = vld [vmem:[#allocation7 + $0x240] sm:$0xff]
    %v196 = vld [vmem:[#allocation7 + $0x248] sm:$0xff]
    %v197 = vld [vmem:[#allocation7 + $0x250] sm:$0xff]
    %v198 = vld [vmem:[#allocation7 + $0x258] sm:$0xff]
    %v199 = vld [vmem:[#allocation7 + $0x260] sm:$0xff]
    %v200 = vld [vmem:[#allocation7 + $0x268] sm:$0xff]
    %v201 = vld [vmem:[#allocation7 + $0x270] sm:$0xff]
    %v202 = vld [vmem:[#allocation7 + $0x278] sm:$0xff]
    %v203 = vld [vmem:[#allocation7 + $0x280] sm:$0xff]
    %v204 = vld [vmem:[#allocation7 + $0x288] sm:$0xff]
    %v205 = vld [vmem:[#allocation7 + $0x290] sm:$0xff]
    %v206 = vld [vmem:[#allocation7 + $0x298] sm:$0xff]
    %v207 = vld [vmem:[#allocation7 + $0x2a0] sm:$0xff]
    %v208 = vld [vmem:[#allocation7 + $0x2a8] sm:$0xff]
    %v209 = vld [vmem:[#allocation7 + $0x2b0] sm:$0xff]
    %v210 = vld [vmem:[#allocation7 + $0x2b8] sm:$0xff]
    %v211 = vld [vmem:[#allocation7 + $0x2c0] sm:$0xff]
    %v212 = vld [vmem:[#allocation7 + $0x2c8] sm:$0xff]
    %v213 = vld [vmem:[#allocation7 + $0x2d0] sm:$0xff]
    %v214 = vld [vmem:[#allocation7 + $0x2d8] sm:$0xff]
    %v215 = vld [vmem:[#allocation7 + $0x2e0] sm:$0xff]
    %v216 = vld [vmem:[#allocation7 + $0x2e8] sm:$0xff]
    %v217 = vld [vmem:[#allocation7 + $0x2f0] sm:$0xff]
    %v218 = vld [vmem:[#allocation7 + $0x2f8] sm:$0xff]
    %v219 = vld [vmem:[#allocation7 + $0x300] sm:$0xff]
    %v220 = vld [vmem:[#allocation7 + $0x308] sm:$0xff]
    %v221 = vld [vmem:[#allocation7 + $0x310] sm:$0xff]
    %v222 = vld [vmem:[#allocation7 + $0x318] sm:$0xff]
    %v223 = vld [vmem:[#allocation7 + $0x320] sm:$0xff]
    %v224 = vld [vmem:[#allocation7 + $0x328] sm:$0xff]
    %v225 = vld [vmem:[#allocation7 + $0x330] sm:$0xff]
    %v226 = vld [vmem:[#allocation7 + $0x338] sm:$0xff]
    %v227 = vld [vmem:[#allocation7 + $0x340] sm:$0xff]
    %v228 = vld [vmem:[#allocation7 + $0x348] sm:$0xff]
    %v229 = vld [vmem:[#allocation7 + $0x350] sm:$0xff]
    %v230 = vld [vmem:[#allocation7 + $0x358] sm:$0xff]
    %v231 = vld [vmem:[#allocation7 + $0x360] sm:$0xff]
    %v232 = vld [vmem:[#allocation7 + $0x368] sm:$0xff]
    %v233 = vld [vmem:[#allocation7 + $0x370] sm:$0xff]
    %v234 = vld [vmem:[#allocation7 + $0x378] sm:$0xff]
    %v235 = vld [vmem:[#allocation7 + $0x380] sm:$0xff]
    %v236 = vld [vmem:[#allocation7 + $0x388] sm:$0xff]
    %v237 = vld [vmem:[#allocation7 + $0x390] sm:$0xff]
    %v238 = vld [vmem:[#allocation7 + $0x398] sm:$0xff]
    %v239 = vld [vmem:[#allocation7 + $0x3a0] sm:$0xff]
    %v240 = vld [vmem:[#allocation7 + $0x3a8] sm:$0xff]
    %v241 = vld [vmem:[#allocation7 + $0x3b0] sm:$0xff]
    %v242 = vld [vmem:[#allocation7 + $0x3b8] sm:$0xff]
    %v243 = vld [vmem:[#allocation7 + $0x3c0] sm:$0xff]
    %v244 = vld [vmem:[#allocation7 + $0x3c8] sm:$0xff]
    %v245 = vld [vmem:[#allocation7 + $0x3d0] sm:$0xff]
    %v246 = vld [vmem:[#allocation7 + $0x3d8] sm:$0xff]
    %v247 = vld [vmem:[#allocation7 + $0x3e0] sm:$0xff]
    %v248 = vld [vmem:[#allocation7 + $0x3e8] sm:$0xff]
    %v249 = vld [vmem:[#allocation7 + $0x3f0] sm:$0xff]
    %v250 = vld [vmem:[#allocation7 + $0x3f8] sm:$0xff]
    %v251 = vld [vmem:[#allocation7 + $0x400] sm:$0xff]
    %v252 = vld [vmem:[#allocation7 + $0x408] sm:$0xff]
    %v253 = vld [vmem:[#allocation7 + $0x410] sm:$0xff]
    %v254 = vld [vmem:[#allocation7 + $0x418] sm:$0xff]
    %v255 = vld [vmem:[#allocation7 + $0x420] sm:$0xff]
    %v256 = vld [vmem:[#allocation7 + $0x428] sm:$0xff]
    %v257 = vld [vmem:[#allocation7 + $0x430] sm:$0xff]
    %v258 = vld [vmem:[#allocation7 + $0x438] sm:$0xff]
    %v259 = vld [vmem:[#allocation7 + $0x440] sm:$0xff]
    %v260 = vld [vmem:[#allocation7 + $0x448] sm:$0xff]
    %v261 = vld [vmem:[#allocation7 + $0x450] sm:$0xff]
    %v262 = vld [vmem:[#allocation7 + $0x458] sm:$0xff]
    %v263 = vld [vmem:[#allocation7 + $0x460] sm:$0xff]
    %v264 = vld [vmem:[#allocation7 + $0x468] sm:$0xff]
    %v265 = vld [vmem:[#allocation7 + $0x470] sm:$0xff]
    %v266 = vld [vmem:[#allocation7 + $0x478] sm:$0xff]
    %v267 = vld [vmem:[#allocation7 + $0x480] sm:$0xff]
    %v268 = vld [vmem:[#allocation7 + $0x488] sm:$0xff]
    %v269 = vld [vmem:[#allocation7 + $0x490] sm:$0xff]
    %v270 = vld [vmem:[#allocation7 + $0x498] sm:$0xff]
    %v271 = vld [vmem:[#allocation7 + $0x4a0] sm:$0xff]
    %v272 = vld [vmem:[#allocation7 + $0x4a8] sm:$0xff]
    %v273 = vld [vmem:[#allocation7 + $0x4b0] sm:$0xff]
    %v274 = vld [vmem:[#allocation7 + $0x4b8] sm:$0xff]
    %v275 = vld [vmem:[#allocation7 + $0x4c0] sm:$0xff]
    %v276 = vld [vmem:[#allocation7 + $0x4c8] sm:$0xff]
    %v277 = vld [vmem:[#allocation7 + $0x4d0] sm:$0xff]
    %v278 = vld [vmem:[#allocation7 + $0x4d8] sm:$0xff]
    %v279 = vld [vmem:[#allocation7 + $0x4e0] sm:$0xff]
    %v280 = vld [vmem:[#allocation7 + $0x4e8] sm:$0xff]
    %v281 = vld [vmem:[#allocation7 + $0x4f0] sm:$0xff]
    %v282 = vld [vmem:[#allocation7 + $0x4f8] sm:$0xff]
    %v283 = vld [vmem:[#allocation7 + $0x500] sm:$0xff]
    %v284 = vld [vmem:[#allocation7 + $0x508] sm:$0xff]
    %v285 = vld [vmem:[#allocation7 + $0x510] sm:$0xff]
    %v286 = vld [vmem:[#allocation7 + $0x518] sm:$0xff]
    %v287 = vld [vmem:[#allocation7 + $0x520] sm:$0xff]
    %v288 = vld [vmem:[#allocation7 + $0x528] sm:$0xff]
    %v289 = vld [vmem:[#allocation7 + $0x530] sm:$0xff]
    %v290 = vld [vmem:[#allocation7 + $0x538] sm:$0xff]
    %v291 = vld [vmem:[#allocation7 + $0x540] sm:$0xff]
    %v292 = vld [vmem:[#allocation7 + $0x548] sm:$0xff]
    %v293 = vld [vmem:[#allocation7 + $0x550] sm:$0xff]
    %v294 = vld [vmem:[#allocation7 + $0x558] sm:$0xff]
    %v295 = vld [vmem:[#allocation7 + $0x560] sm:$0xff]
    %v296 = vld [vmem:[#allocation7 + $0x568] sm:$0xff]
    %v297 = vld [vmem:[#allocation7 + $0x570] sm:$0xff]
    %v298 = vld [vmem:[#allocation7 + $0x578] sm:$0xff]
    %v299 = vld [vmem:[#allocation7 + $0x580] sm:$0xff]
    %v300 = vld [vmem:[#allocation7 + $0x588] sm:$0xff]
    %v301 = vld [vmem:[#allocation7 + $0x590] sm:$0xff]
    %v302 = vld [vmem:[#allocation7 + $0x598] sm:$0xff]
    %v303 = vld [vmem:[#allocation7 + $0x5a0] sm:$0xff]
    %v304 = vld [vmem:[#allocation7 + $0x5a8] sm:$0xff]
    %v305 = vld [vmem:[#allocation7 + $0x5b0] sm:$0xff]
    %v306 = vld [vmem:[#allocation7 + $0x5b8] sm:$0xff]
    %v307 = vld [vmem:[#allocation7 + $0x5c0] sm:$0xff]
    %v308 = vld [vmem:[#allocation7 + $0x5c8] sm:$0xff]
    %v309 = vld [vmem:[#allocation7 + $0x5d0] sm:$0xff]
    %v310 = vld [vmem:[#allocation7 + $0x5d8] sm:$0xff]
    %v311 = vld [vmem:[#allocation7 + $0x5e0] sm:$0xff]
    %v312 = vld [vmem:[#allocation7 + $0x5e8] sm:$0xff]
    %v313 = vld [vmem:[#allocation7 + $0x5f0] sm:$0xff]
    %v314 = vld [vmem:[#allocation7 + $0x5f8] sm:$0xff]
    %v315 = vld [vmem:[#allocation7 + $0x600] sm:$0xff]
    %v316 = vld [vmem:[#allocation7 + $0x608] sm:$0xff]
    %v317 = vld [vmem:[#allocation7 + $0x610] sm:$0xff]
    %v318 = vld [vmem:[#allocation7 + $0x618] sm:$0xff]
    %v319 = vld [vmem:[#allocation5] sm:$0xff]
    %v320 = vpack.c.bf16 %v319, %v319
    %v321 = vld [vmem:[#allocation8] sm:$0xff]
    %v322 = vld [vmem:[#allocation8 + $0x8] sm:$0xff]
    %v323 = vld [vmem:[#allocation8 + $0x10] sm:$0x11]
    %v324 = vld [vmem:[#allocation8 + $0x18] sm:$0x11]
    %v329 = vunpack.c.l.b16 %v321
    %v330 = vunpack.c.h.b16 %v321
    %v331 = vunpack.c.l.b16 %v322
    %v332 = vunpack.c.h.b16 %v322
    %v333 = vunpack.c.l.b16 %v323
    %v334 = vunpack.c.h.b16 %v323
    %v335 = vunpack.c.l.b16 %v324
    %v336 = vunpack.c.h.b16 %v324
    %v337 = vpack.c.b16 %v333, %v329
    %v338 = vpack.c.b16 %v334, %v330
    %v339 = vpack.c.b16 %v335, %v331
    %v340 = vpack.c.b16 %v336, %v332
    %vm341 = vcmask 80896
    %v343 = vsel %vm341, %v320, 0
    %vm345 = vcmask 1044480
    %v347 = vsel %vm345, %v337, 0
    %v350 = vsel %vm345, %v338, 0
    %v353 = vsel %vm345, %v339, 0
    %v356 = vsel %vm345, %v340, 0
    %358 = vmatpush.bf16.msra.mxu0 0
    %359 = vmatpush.bf16.msra.mxu0 0
    %360 = vmatpush.bf16.msra.mxu0 0
    %361 = vmatpush.bf16.msra.mxu0 0
    %362 = vmatpush.bf16.msra.mxu0 0
    %363 = vmatpush.bf16.msra.mxu0 0
    %364 = vmatpush.bf16.msra.mxu0 0
    %365 = vmatpush.bf16.msra.mxu0 %v347
    %366 = vmatmul.bf16.gmra.mxu0 %v343
    %v367 = vpop.f32.mrf.mxu0
    %v368 = vadd.f32 0.0, %v367
    %v369 = vpop.f32.mrf.mxu0
    %370 = vdwg.mxu0
    %371 = vmatpush.bf16.msra.mxu0 0
    %372 = vmatpush.bf16.msra.mxu0 0
    %373 = vmatpush.bf16.msra.mxu0 0
    %374 = vmatpush.bf16.msra.mxu0 0
    %375 = vmatpush.bf16.msra.mxu0 0
    %376 = vmatpush.bf16.msra.mxu0 0
    %377 = vmatpush.bf16.msra.mxu0 0
    %378 = vmatpush.bf16.msra.mxu0 %v350
    %379 = vmatmul.bf16.gmra.mxu0 %v343
    %v380 = vpop.f32.mrf.mxu0
    %v381 = vadd.f32 0.0, %v380
    %v382 = vpop.f32.mrf.mxu0
    %383 = vdwg.mxu0
    %384 = vmatpush.bf16.msra.mxu0 0
    %385 = vmatpush.bf16.msra.mxu0 0
    %386 = vmatpush.bf16.msra.mxu0 0
    %387 = vmatpush.bf16.msra.mxu0 0
    %388 = vmatpush.bf16.msra.mxu0 0
    %389 = vmatpush.bf16.msra.mxu0 0
    %390 = vmatpush.bf16.msra.mxu0 0
    %391 = vmatpush.bf16.msra.mxu0 %v353
    %392 = vmatmul.bf16.gmra.mxu0 %v343
    %v393 = vpop.f32.mrf.mxu0
    %v394 = vadd.f32 0.0, %v393
    %v395 = vpop.f32.mrf.mxu0
    %396 = vdwg.mxu0
    %397 = vmatpush.bf16.msra.mxu0 0
    %398 = vmatpush.bf16.msra.mxu0 0
    %399 = vmatpush.bf16.msra.mxu0 0
    %400 = vmatpush.bf16.msra.mxu0 0
    %401 = vmatpush.bf16.msra.mxu0 0
    %402 = vmatpush.bf16.msra.mxu0 0
    %403 = vmatpush.bf16.msra.mxu0 0
    %404 = vmatpush.bf16.msra.mxu0 %v356
    %405 = vmatmul.bf16.gmra.mxu0 %v343
    %v406 = vpop.f32.mrf.mxu0
    %v407 = vadd.f32 0.0, %v406
    %v408 = vpop.f32.mrf.mxu0
    %409 = vdwg.mxu0
    %v606 = vunpack.c.l.b16 %v123
    %v607 = vunpack.c.h.b16 %v123
    %v608 = vunpack.c.l.b16 %v124
    %v609 = vunpack.c.h.b16 %v124
    %v610 = vunpack.c.l.b16 %v125
    %v611 = vunpack.c.h.b16 %v125
    %v612 = vunpack.c.l.b16 %v126
    %v613 = vunpack.c.h.b16 %v126
    %v614 = vunpack.c.l.b16 %v127
    %v615 = vunpack.c.h.b16 %v127
    %v616 = vunpack.c.l.b16 %v128
    %v617 = vunpack.c.h.b16 %v128
    %v618 = vunpack.c.l.b16 %v129
    %v619 = vunpack.c.h.b16 %v129
    %v620 = vunpack.c.l.b16 %v130
    %v621 = vunpack.c.h.b16 %v130
    %v622 = vunpack.c.l.b16 %v131
    %v623 = vunpack.c.h.b16 %v131
    %v624 = vunpack.c.l.b16 %v132
    %v625 = vunpack.c.h.b16 %v132
    %v626 = vunpack.c.l.b16 %v133
    %v627 = vunpack.c.h.b16 %v133
    %v628 = vunpack.c.l.b16 %v134
    %v629 = vunpack.c.h.b16 %v134
    %v630 = vunpack.c.l.b16 %v135
    %v631 = vunpack.c.h.b16 %v135
    %v632 = vunpack.c.l.b16 %v136
    %v633 = vunpack.c.h.b16 %v136
    %v634 = vunpack.c.l.b16 %v137
    %v635 = vunpack.c.h.b16 %v137
    %v636 = vunpack.c.l.b16 %v138
    %v637 = vunpack.c.h.b16 %v138
    %v638 = vunpack.c.l.b16 %v139
    %v639 = vunpack.c.h.b16 %v139
    %v640 = vunpack.c.l.b16 %v140
    %v641 = vunpack.c.h.b16 %v140
    %v642 = vunpack.c.l.b16 %v141
    %v643 = vunpack.c.h.b16 %v141
    %v644 = vunpack.c.l.b16 %v142
    %v645 = vunpack.c.h.b16 %v142
    %v646 = vunpack.c.l.b16 %v143
    %v647 = vunpack.c.h.b16 %v143
    %v648 = vunpack.c.l.b16 %v144
    %v649 = vunpack.c.h.b16 %v144
    %v650 = vunpack.c.l.b16 %v145
    %v651 = vunpack.c.h.b16 %v145
    %v652 = vunpack.c.l.b16 %v146
    %v653 = vunpack.c.h.b16 %v146
    %v654 = vunpack.c.l.b16 %v147
    %v655 = vunpack.c.h.b16 %v147
    %v656 = vunpack.c.l.b16 %v148
    %v657 = vunpack.c.h.b16 %v148
    %v658 = vunpack.c.l.b16 %v149
    %v659 = vunpack.c.h.b16 %v149
    %v660 = vunpack.c.l.b16 %v150
    %v661 = vunpack.c.h.b16 %v150
    %v662 = vunpack.c.l.b16 %v151
    %v663 = vunpack.c.h.b16 %v151
    %v664 = vunpack.c.l.b16 %v152
    %v665 = vunpack.c.h.b16 %v152
    %v666 = vunpack.c.l.b16 %v153
    %v667 = vunpack.c.h.b16 %v153
    %v668 = vunpack.c.l.b16 %v154
    %v669 = vunpack.c.h.b16 %v154
    %v670 = vunpack.c.l.b16 %v155
    %v671 = vunpack.c.h.b16 %v155
    %v672 = vunpack.c.l.b16 %v156
    %v673 = vunpack.c.h.b16 %v156
    %v674 = vunpack.c.l.b16 %v157
    %v675 = vunpack.c.h.b16 %v157
    %v676 = vunpack.c.l.b16 %v158
    %v677 = vunpack.c.h.b16 %v158
    %v678 = vunpack.c.l.b16 %v159
    %v679 = vunpack.c.h.b16 %v159
    %v680 = vunpack.c.l.b16 %v160
    %v681 = vunpack.c.h.b16 %v160
    %v682 = vunpack.c.l.b16 %v161
    %v683 = vunpack.c.h.b16 %v161
    %v684 = vunpack.c.l.b16 %v162
    %v685 = vunpack.c.h.b16 %v162
    %v686 = vunpack.c.l.b16 %v163
    %v687 = vunpack.c.h.b16 %v163
    %v688 = vunpack.c.l.b16 %v164
    %v689 = vunpack.c.h.b16 %v164
    %v690 = vunpack.c.l.b16 %v165
    %v691 = vunpack.c.h.b16 %v165
    %v692 = vunpack.c.l.b16 %v166
    %v693 = vunpack.c.h.b16 %v166
    %v694 = vunpack.c.l.b16 %v167
    %v695 = vunpack.c.h.b16 %v167
    %v696 = vunpack.c.l.b16 %v168
    %v697 = vunpack.c.h.b16 %v168
    %v698 = vunpack.c.l.b16 %v169
    %v699 = vunpack.c.h.b16 %v169
    %v700 = vunpack.c.l.b16 %v170
    %v701 = vunpack.c.h.b16 %v170
    %v702 = vunpack.c.l.b16 %v171
    %v703 = vunpack.c.h.b16 %v171
    %v704 = vunpack.c.l.b16 %v172
    %v705 = vunpack.c.h.b16 %v172
    %v706 = vunpack.c.l.b16 %v173
    %v707 = vunpack.c.h.b16 %v173
    %v708 = vunpack.c.l.b16 %v174
    %v709 = vunpack.c.h.b16 %v174
    %v710 = vunpack.c.l.b16 %v175
    %v711 = vunpack.c.h.b16 %v175
    %v712 = vunpack.c.l.b16 %v176
    %v713 = vunpack.c.h.b16 %v176
    %v714 = vunpack.c.l.b16 %v177
    %v715 = vunpack.c.h.b16 %v177
    %v716 = vunpack.c.l.b16 %v178
    %v717 = vunpack.c.h.b16 %v178
    %v718 = vunpack.c.l.b16 %v179
    %v719 = vunpack.c.h.b16 %v179
    %v720 = vunpack.c.l.b16 %v180
    %v721 = vunpack.c.h.b16 %v180
    %v722 = vunpack.c.l.b16 %v181
    %v723 = vunpack.c.h.b16 %v181
    %v724 = vunpack.c.l.b16 %v182
    %v725 = vunpack.c.h.b16 %v182
    %v726 = vunpack.c.l.b16 %v183
    %v727 = vunpack.c.h.b16 %v183
    %v728 = vunpack.c.l.b16 %v184
    %v729 = vunpack.c.h.b16 %v184
    %v730 = vunpack.c.l.b16 %v185
    %v731 = vunpack.c.h.b16 %v185
    %v732 = vunpack.c.l.b16 %v186
    %v733 = vunpack.c.h.b16 %v186
    %v734 = vunpack.c.l.b16 %v187
    %v735 = vunpack.c.h.b16 %v187
    %v736 = vunpack.c.l.b16 %v188
    %v737 = vunpack.c.h.b16 %v188
    %v738 = vunpack.c.l.b16 %v189
    %v739 = vunpack.c.h.b16 %v189
    %v740 = vunpack.c.l.b16 %v190
    %v741 = vunpack.c.h.b16 %v190
    %v742 = vunpack.c.l.b16 %v191
    %v743 = vunpack.c.h.b16 %v191
    %v744 = vunpack.c.l.b16 %v192
    %v745 = vunpack.c.h.b16 %v192
    %v746 = vunpack.c.l.b16 %v193
    %v747 = vunpack.c.h.b16 %v193
    %v748 = vunpack.c.l.b16 %v194
    %v749 = vunpack.c.h.b16 %v194
    %v750 = vunpack.c.l.b16 %v195
    %v751 = vunpack.c.h.b16 %v195
    %v752 = vunpack.c.l.b16 %v196
    %v753 = vunpack.c.h.b16 %v196
    %v754 = vunpack.c.l.b16 %v197
    %v755 = vunpack.c.h.b16 %v197
    %v756 = vunpack.c.l.b16 %v198
    %v757 = vunpack.c.h.b16 %v198
    %v758 = vunpack.c.l.b16 %v199
    %v759 = vunpack.c.h.b16 %v199
    %v760 = vunpack.c.l.b16 %v200
    %v761 = vunpack.c.h.b16 %v200
    %v762 = vunpack.c.l.b16 %v201
    %v763 = vunpack.c.h.b16 %v201
    %v764 = vunpack.c.l.b16 %v202
    %v765 = vunpack.c.h.b16 %v202
    %v766 = vunpack.c.l.b16 %v203
    %v767 = vunpack.c.h.b16 %v203
    %v768 = vunpack.c.l.b16 %v204
    %v769 = vunpack.c.h.b16 %v204
    %v770 = vunpack.c.l.b16 %v205
    %v771 = vunpack.c.h.b16 %v205
    %v772 = vunpack.c.l.b16 %v206
    %v773 = vunpack.c.h.b16 %v206
    %v774 = vunpack.c.l.b16 %v207
    %v775 = vunpack.c.h.b16 %v207
    %v776 = vunpack.c.l.b16 %v208
    %v777 = vunpack.c.h.b16 %v208
    %v778 = vunpack.c.l.b16 %v209
    %v779 = vunpack.c.h.b16 %v209
    %v780 = vunpack.c.l.b16 %v210
    %v781 = vunpack.c.h.b16 %v210
    %v782 = vunpack.c.l.b16 %v211
    %v783 = vunpack.c.h.b16 %v211
    %v784 = vunpack.c.l.b16 %v212
    %v785 = vunpack.c.h.b16 %v212
    %v786 = vunpack.c.l.b16 %v213
    %v787 = vunpack.c.h.b16 %v213
    %v788 = vunpack.c.l.b16 %v214
    %v789 = vunpack.c.h.b16 %v214
    %v790 = vunpack.c.l.b16 %v215
    %v791 = vunpack.c.h.b16 %v215
    %v792 = vunpack.c.l.b16 %v216
    %v793 = vunpack.c.h.b16 %v216
    %v794 = vunpack.c.l.b16 %v217
    %v795 = vunpack.c.h.b16 %v217
    %v796 = vunpack.c.l.b16 %v218
    %v797 = vunpack.c.h.b16 %v218
    %v798 = vunpack.c.l.b16 %v219
    %v799 = vunpack.c.h.b16 %v219
    %v800 = vunpack.c.l.b16 %v220
    %v801 = vunpack.c.h.b16 %v220
    %v802 = vunpack.c.l.b16 %v221
    %v803 = vunpack.c.h.b16 %v221
    %v804 = vunpack.c.l.b16 %v222
    %v805 = vunpack.c.h.b16 %v222
    %v806 = vunpack.c.l.b16 %v223
    %v807 = vunpack.c.h.b16 %v223
    %v808 = vunpack.c.l.b16 %v224
    %v809 = vunpack.c.h.b16 %v224
    %v810 = vunpack.c.l.b16 %v225
    %v811 = vunpack.c.h.b16 %v225
    %v812 = vunpack.c.l.b16 %v226
    %v813 = vunpack.c.h.b16 %v226
    %v814 = vunpack.c.l.b16 %v227
    %v815 = vunpack.c.h.b16 %v227
    %v816 = vunpack.c.l.b16 %v228
    %v817 = vunpack.c.h.b16 %v228
    %v818 = vunpack.c.l.b16 %v229
    %v819 = vunpack.c.h.b16 %v229
    %v820 = vunpack.c.l.b16 %v230
    %v821 = vunpack.c.h.b16 %v230
    %v822 = vunpack.c.l.b16 %v231
    %v823 = vunpack.c.h.b16 %v231
    %v824 = vunpack.c.l.b16 %v232
    %v825 = vunpack.c.h.b16 %v232
    %v826 = vunpack.c.l.b16 %v233
    %v827 = vunpack.c.h.b16 %v233
    %v828 = vunpack.c.l.b16 %v234
    %v829 = vunpack.c.h.b16 %v234
    %v830 = vunpack.c.l.b16 %v235
    %v831 = vunpack.c.h.b16 %v235
    %v832 = vunpack.c.l.b16 %v236
    %v833 = vunpack.c.h.b16 %v236
    %v834 = vunpack.c.l.b16 %v237
    %v835 = vunpack.c.h.b16 %v237
    %v836 = vunpack.c.l.b16 %v238
    %v837 = vunpack.c.h.b16 %v238
    %v838 = vunpack.c.l.b16 %v239
    %v839 = vunpack.c.h.b16 %v239
    %v840 = vunpack.c.l.b16 %v240
    %v841 = vunpack.c.h.b16 %v240
    %v842 = vunpack.c.l.b16 %v241
    %v843 = vunpack.c.h.b16 %v241
    %v844 = vunpack.c.l.b16 %v242
    %v845 = vunpack.c.h.b16 %v242
    %v846 = vunpack.c.l.b16 %v243
    %v847 = vunpack.c.h.b16 %v243
    %v848 = vunpack.c.l.b16 %v244
    %v849 = vunpack.c.h.b16 %v244
    %v850 = vunpack.c.l.b16 %v245
    %v851 = vunpack.c.h.b16 %v245
    %v852 = vunpack.c.l.b16 %v246
    %v853 = vunpack.c.h.b16 %v246
    %v854 = vunpack.c.l.b16 %v247
    %v855 = vunpack.c.h.b16 %v247
    %v856 = vunpack.c.l.b16 %v248
    %v857 = vunpack.c.h.b16 %v248
    %v858 = vunpack.c.l.b16 %v249
    %v859 = vunpack.c.h.b16 %v249
    %v860 = vunpack.c.l.b16 %v250
    %v861 = vunpack.c.h.b16 %v250
    %v862 = vunpack.c.l.b16 %v251
    %v863 = vunpack.c.h.b16 %v251
    %v864 = vunpack.c.l.b16 %v252
    %v865 = vunpack.c.h.b16 %v252
    %v866 = vunpack.c.l.b16 %v253
    %v867 = vunpack.c.h.b16 %v253
    %v868 = vunpack.c.l.b16 %v254
    %v869 = vunpack.c.h.b16 %v254
    %v870 = vunpack.c.l.b16 %v255
    %v871 = vunpack.c.h.b16 %v255
    %v872 = vunpack.c.l.b16 %v256
    %v873 = vunpack.c.h.b16 %v256
    %v874 = vunpack.c.l.b16 %v257
    %v875 = vunpack.c.h.b16 %v257
    %v876 = vunpack.c.l.b16 %v258
    %v877 = vunpack.c.h.b16 %v258
    %v878 = vunpack.c.l.b16 %v259
    %v879 = vunpack.c.h.b16 %v259
    %v880 = vunpack.c.l.b16 %v260
    %v881 = vunpack.c.h.b16 %v260
    %v882 = vunpack.c.l.b16 %v261
    %v883 = vunpack.c.h.b16 %v261
    %v884 = vunpack.c.l.b16 %v262
    %v885 = vunpack.c.h.b16 %v262
    %v886 = vunpack.c.l.b16 %v263
    %v887 = vunpack.c.h.b16 %v263
    %v888 = vunpack.c.l.b16 %v264
    %v889 = vunpack.c.h.b16 %v264
    %v890 = vunpack.c.l.b16 %v265
    %v891 = vunpack.c.h.b16 %v265
    %v892 = vunpack.c.l.b16 %v266
    %v893 = vunpack.c.h.b16 %v266
    %v894 = vunpack.c.l.b16 %v267
    %v895 = vunpack.c.h.b16 %v267
    %v896 = vunpack.c.l.b16 %v268
    %v897 = vunpack.c.h.b16 %v268
    %v898 = vunpack.c.l.b16 %v269
    %v899 = vunpack.c.h.b16 %v269
    %v900 = vunpack.c.l.b16 %v270
    %v901 = vunpack.c.h.b16 %v270
    %v902 = vunpack.c.l.b16 %v271
    %v903 = vunpack.c.h.b16 %v271
    %v904 = vunpack.c.l.b16 %v272
    %v905 = vunpack.c.h.b16 %v272
    %v906 = vunpack.c.l.b16 %v273
    %v907 = vunpack.c.h.b16 %v273
    %v908 = vunpack.c.l.b16 %v274
    %v909 = vunpack.c.h.b16 %v274
    %v910 = vunpack.c.l.b16 %v275
    %v911 = vunpack.c.h.b16 %v275
    %v912 = vunpack.c.l.b16 %v276
    %v913 = vunpack.c.h.b16 %v276
    %v914 = vunpack.c.l.b16 %v277
    %v915 = vunpack.c.h.b16 %v277
    %v916 = vunpack.c.l.b16 %v278
    %v917 = vunpack.c.h.b16 %v278
    %v918 = vunpack.c.l.b16 %v279
    %v919 = vunpack.c.h.b16 %v279
    %v920 = vunpack.c.l.b16 %v280
    %v921 = vunpack.c.h.b16 %v280
    %v922 = vunpack.c.l.b16 %v281
    %v923 = vunpack.c.h.b16 %v281
    %v924 = vunpack.c.l.b16 %v282
    %v925 = vunpack.c.h.b16 %v282
    %v926 = vunpack.c.l.b16 %v283
    %v927 = vunpack.c.h.b16 %v283
    %v928 = vunpack.c.l.b16 %v284
    %v929 = vunpack.c.h.b16 %v284
    %v930 = vunpack.c.l.b16 %v285
    %v931 = vunpack.c.h.b16 %v285
    %v932 = vunpack.c.l.b16 %v286
    %v933 = vunpack.c.h.b16 %v286
    %v934 = vunpack.c.l.b16 %v287
    %v935 = vunpack.c.h.b16 %v287
    %v936 = vunpack.c.l.b16 %v288
    %v937 = vunpack.c.h.b16 %v288
    %v938 = vunpack.c.l.b16 %v289
    %v939 = vunpack.c.h.b16 %v289
    %v940 = vunpack.c.l.b16 %v290
    %v941 = vunpack.c.h.b16 %v290
    %v942 = vunpack.c.l.b16 %v291
    %v943 = vunpack.c.h.b16 %v291
    %v944 = vunpack.c.l.b16 %v292
    %v945 = vunpack.c.h.b16 %v292
    %v946 = vunpack.c.l.b16 %v293
    %v947 = vunpack.c.h.b16 %v293
    %v948 = vunpack.c.l.b16 %v294
    %v949 = vunpack.c.h.b16 %v294
    %v950 = vunpack.c.l.b16 %v295
    %v951 = vunpack.c.h.b16 %v295
    %v952 = vunpack.c.l.b16 %v296
    %v953 = vunpack.c.h.b16 %v296
    %v954 = vunpack.c.l.b16 %v297
    %v955 = vunpack.c.h.b16 %v297
    %v956 = vunpack.c.l.b16 %v298
    %v957 = vunpack.c.h.b16 %v298
    %v958 = vunpack.c.l.b16 %v299
    %v959 = vunpack.c.h.b16 %v299
    %v960 = vunpack.c.l.b16 %v300
    %v961 = vunpack.c.h.b16 %v300
    %v962 = vunpack.c.l.b16 %v301
    %v963 = vunpack.c.h.b16 %v301
    %v964 = vunpack.c.l.b16 %v302
    %v965 = vunpack.c.h.b16 %v302
    %v966 = vunpack.c.l.b16 %v303
    %v967 = vunpack.c.h.b16 %v303
    %v968 = vunpack.c.l.b16 %v304
    %v969 = vunpack.c.h.b16 %v304
    %v970 = vunpack.c.l.b16 %v305
    %v971 = vunpack.c.h.b16 %v305
    %v972 = vunpack.c.l.b16 %v306
    %v973 = vunpack.c.h.b16 %v306
    %v974 = vunpack.c.l.b16 %v307
    %v975 = vunpack.c.h.b16 %v307
    %v976 = vunpack.c.l.b16 %v308
    %v977 = vunpack.c.h.b16 %v308
    %v978 = vunpack.c.l.b16 %v309
    %v979 = vunpack.c.h.b16 %v309
    %v980 = vunpack.c.l.b16 %v310
    %v981 = vunpack.c.h.b16 %v310
    %v982 = vunpack.c.l.b16 %v311
    %v983 = vunpack.c.h.b16 %v311
    %v984 = vunpack.c.l.b16 %v312
    %v985 = vunpack.c.h.b16 %v312
    %v986 = vunpack.c.l.b16 %v313
    %v987 = vunpack.c.h.b16 %v313
    %v988 = vunpack.c.l.b16 %v314
    %v989 = vunpack.c.h.b16 %v314
    %v990 = vunpack.c.l.b16 %v315
    %v991 = vunpack.c.h.b16 %v315
    %v992 = vunpack.c.l.b16 %v316
    %v993 = vunpack.c.h.b16 %v316
    %v994 = vunpack.c.l.b16 %v317
    %v995 = vunpack.c.h.b16 %v317
    %v996 = vunpack.c.l.b16 %v318
    %v997 = vunpack.c.h.b16 %v318
    %v998 = vpack.c.b16 %v610, %v606
    %v999 = vpack.c.b16 %v611, %v607
    %v1000 = vpack.c.b16 %v612, %v608
    %v1001 = vpack.c.b16 %v613, %v609
    %v1002 = vpack.c.b16 %v618, %v614
    %v1003 = vpack.c.b16 %v619, %v615
    %v1004 = vpack.c.b16 %v620, %v616
    %v1005 = vpack.c.b16 %v621, %v617
    %v1006 = vpack.c.b16 %v626, %v622
    %v1007 = vpack.c.b16 %v627, %v623
    %v1008 = vpack.c.b16 %v628, %v624
    %v1009 = vpack.c.b16 %v629, %v625
    %v1010 = vpack.c.b16 %v634, %v630
    %v1011 = vpack.c.b16 %v635, %v631
    %v1012 = vpack.c.b16 %v636, %v632
    %v1013 = vpack.c.b16 %v637, %v633
    %v1014 = vpack.c.b16 %v642, %v638
    %v1015 = vpack.c.b16 %v643, %v639
    %v1016 = vpack.c.b16 %v644, %v640
    %v1017 = vpack.c.b16 %v645, %v641
    %v1018 = vpack.c.b16 %v650, %v646
    %v1019 = vpack.c.b16 %v651, %v647
    %v1020 = vpack.c.b16 %v652, %v648
    %v1021 = vpack.c.b16 %v653, %v649
    %v1022 = vpack.c.b16 %v658, %v654
    %v1023 = vpack.c.b16 %v659, %v655
    %v1024 = vpack.c.b16 %v660, %v656
    %v1025 = vpack.c.b16 %v661, %v657
    %v1026 = vpack.c.b16 %v666, %v662
    %v1027 = vpack.c.b16 %v667, %v663
    %v1028 = vpack.c.b16 %v668, %v664
    %v1029 = vpack.c.b16 %v669, %v665
    %v1030 = vpack.c.b16 %v674, %v670
    %v1031 = vpack.c.b16 %v675, %v671
    %v1032 = vpack.c.b16 %v676, %v672
    %v1033 = vpack.c.b16 %v677, %v673
    %v1034 = vpack.c.b16 %v682, %v678
    %v1035 = vpack.c.b16 %v683, %v679
    %v1036 = vpack.c.b16 %v684, %v680
    %v1037 = vpack.c.b16 %v685, %v681
    %v1038 = vpack.c.b16 %v690, %v686
    %v1039 = vpack.c.b16 %v691, %v687
    %v1040 = vpack.c.b16 %v692, %v688
    %v1041 = vpack.c.b16 %v693, %v689
    %v1042 = vpack.c.b16 %v698, %v694
    %v1043 = vpack.c.b16 %v699, %v695
    %v1044 = vpack.c.b16 %v700, %v696
    %v1045 = vpack.c.b16 %v701, %v697
    %v1046 = vpack.c.b16 %v706, %v702
    %v1047 = vpack.c.b16 %v707, %v703
    %v1048 = vpack.c.b16 %v708, %v704
    %v1049 = vpack.c.b16 %v709, %v705
    %v1050 = vpack.c.b16 %v714, %v710
    %v1051 = vpack.c.b16 %v715, %v711
    %v1052 = vpack.c.b16 %v716, %v712
    %v1053 = vpack.c.b16 %v717, %v713
    %v1054 = vpack.c.b16 %v722, %v718
    %v1055 = vpack.c.b16 %v723, %v719
    %v1056 = vpack.c.b16 %v724, %v720
    %v1057 = vpack.c.b16 %v725, %v721
    %v1058 = vpack.c.b16 %v730, %v726
    %v1059 = vpack.c.b16 %v731, %v727
    %v1060 = vpack.c.b16 %v732, %v728
    %v1061 = vpack.c.b16 %v733, %v729
    %v1062 = vpack.c.b16 %v738, %v734
    %v1063 = vpack.c.b16 %v739, %v735
    %v1064 = vpack.c.b16 %v740, %v736
    %v1065 = vpack.c.b16 %v741, %v737
    %v1066 = vpack.c.b16 %v746, %v742
    %v1067 = vpack.c.b16 %v747, %v743
    %v1068 = vpack.c.b16 %v748, %v744
    %v1069 = vpack.c.b16 %v749, %v745
    %v1070 = vpack.c.b16 %v754, %v750
    %v1071 = vpack.c.b16 %v755, %v751
    %v1072 = vpack.c.b16 %v756, %v752
    %v1073 = vpack.c.b16 %v757, %v753
    %v1074 = vpack.c.b16 %v762, %v758
    %v1075 = vpack.c.b16 %v763, %v759
    %v1076 = vpack.c.b16 %v764, %v760
    %v1077 = vpack.c.b16 %v765, %v761
    %v1078 = vpack.c.b16 %v770, %v766
    %v1079 = vpack.c.b16 %v771, %v767
    %v1080 = vpack.c.b16 %v772, %v768
    %v1081 = vpack.c.b16 %v773, %v769
    %v1082 = vpack.c.b16 %v778, %v774
    %v1083 = vpack.c.b16 %v779, %v775
    %v1084 = vpack.c.b16 %v780, %v776
    %v1085 = vpack.c.b16 %v781, %v777
    %v1086 = vpack.c.b16 %v786, %v782
    %v1087 = vpack.c.b16 %v787, %v783
    %v1088 = vpack.c.b16 %v788, %v784
    %v1089 = vpack.c.b16 %v789, %v785
    %v1090 = vpack.c.b16 %v794, %v790
    %v1091 = vpack.c.b16 %v795, %v791
    %v1092 = vpack.c.b16 %v796, %v792
    %v1093 = vpack.c.b16 %v797, %v793
    %v1094 = vpack.c.b16 %v802, %v798
    %v1095 = vpack.c.b16 %v803, %v799
    %v1096 = vpack.c.b16 %v804, %v800
    %v1097 = vpack.c.b16 %v805, %v801
    %v1098 = vpack.c.b16 %v810, %v806
    %v1099 = vpack.c.b16 %v811, %v807
    %v1100 = vpack.c.b16 %v812, %v808
    %v1101 = vpack.c.b16 %v813, %v809
    %v1102 = vpack.c.b16 %v818, %v814
    %v1103 = vpack.c.b16 %v819, %v815
    %v1104 = vpack.c.b16 %v820, %v816
    %v1105 = vpack.c.b16 %v821, %v817
    %v1106 = vpack.c.b16 %v826, %v822
    %v1107 = vpack.c.b16 %v827, %v823
    %v1108 = vpack.c.b16 %v828, %v824
    %v1109 = vpack.c.b16 %v829, %v825
    %v1110 = vpack.c.b16 %v834, %v830
    %v1111 = vpack.c.b16 %v835, %v831
    %v1112 = vpack.c.b16 %v836, %v832
    %v1113 = vpack.c.b16 %v837, %v833
    %v1114 = vpack.c.b16 %v842, %v838
    %v1115 = vpack.c.b16 %v843, %v839
    %v1116 = vpack.c.b16 %v844, %v840
    %v1117 = vpack.c.b16 %v845, %v841
    %v1118 = vpack.c.b16 %v850, %v846
    %v1119 = vpack.c.b16 %v851, %v847
    %v1120 = vpack.c.b16 %v852, %v848
    %v1121 = vpack.c.b16 %v853, %v849
    %v1122 = vpack.c.b16 %v858, %v854
    %v1123 = vpack.c.b16 %v859, %v855
    %v1124 = vpack.c.b16 %v860, %v856
    %v1125 = vpack.c.b16 %v861, %v857
    %v1126 = vpack.c.b16 %v866, %v862
    %v1127 = vpack.c.b16 %v867, %v863
    %v1128 = vpack.c.b16 %v868, %v864
    %v1129 = vpack.c.b16 %v869, %v865
    %v1130 = vpack.c.b16 %v874, %v870
    %v1131 = vpack.c.b16 %v875, %v871
    %v1132 = vpack.c.b16 %v876, %v872
    %v1133 = vpack.c.b16 %v877, %v873
    %v1134 = vpack.c.b16 %v882, %v878
    %v1135 = vpack.c.b16 %v883, %v879
    %v1136 = vpack.c.b16 %v884, %v880
    %v1137 = vpack.c.b16 %v885, %v881
    %v1138 = vpack.c.b16 %v890, %v886
    %v1139 = vpack.c.b16 %v891, %v887
    %v1140 = vpack.c.b16 %v892, %v888
    %v1141 = vpack.c.b16 %v893, %v889
    %v1142 = vpack.c.b16 %v898, %v894
    %v1143 = vpack.c.b16 %v899, %v895
    %v1144 = vpack.c.b16 %v900, %v896
    %v1145 = vpack.c.b16 %v901, %v897
    %v1146 = vpack.c.b16 %v906, %v902
    %v1147 = vpack.c.b16 %v907, %v903
    %v1148 = vpack.c.b16 %v908, %v904
    %v1149 = vpack.c.b16 %v909, %v905
    %v1150 = vpack.c.b16 %v914, %v910
    %v1151 = vpack.c.b16 %v915, %v911
    %v1152 = vpack.c.b16 %v916, %v912
    %v1153 = vpack.c.b16 %v917, %v913
    %v1154 = vpack.c.b16 %v922, %v918
    %v1155 = vpack.c.b16 %v923, %v919
    %v1156 = vpack.c.b16 %v924, %v920
    %v1157 = vpack.c.b16 %v925, %v921
    %v1158 = vpack.c.b16 %v930, %v926
    %v1159 = vpack.c.b16 %v931, %v927
    %v1160 = vpack.c.b16 %v932, %v928
    %v1161 = vpack.c.b16 %v933, %v929
    %v1162 = vpack.c.b16 %v938, %v934
    %v1163 = vpack.c.b16 %v939, %v935
    %v1164 = vpack.c.b16 %v940, %v936
    %v1165 = vpack.c.b16 %v941, %v937
    %v1166 = vpack.c.b16 %v946, %v942
    %v1167 = vpack.c.b16 %v947, %v943
    %v1168 = vpack.c.b16 %v948, %v944
    %v1169 = vpack.c.b16 %v949, %v945
    %v1170 = vpack.c.b16 %v954, %v950
    %v1171 = vpack.c.b16 %v955, %v951
    %v1172 = vpack.c.b16 %v956, %v952
    %v1173 = vpack.c.b16 %v957, %v953
    %v1174 = vpack.c.b16 %v962, %v958
    %v1175 = vpack.c.b16 %v963, %v959
    %v1176 = vpack.c.b16 %v964, %v960
    %v1177 = vpack.c.b16 %v965, %v961
    %v1178 = vpack.c.b16 %v970, %v966
    %v1179 = vpack.c.b16 %v971, %v967
    %v1180 = vpack.c.b16 %v972, %v968
    %v1181 = vpack.c.b16 %v973, %v969
    %v1182 = vpack.c.b16 %v978, %v974
    %v1183 = vpack.c.b16 %v979, %v975
    %v1184 = vpack.c.b16 %v980, %v976
    %v1185 = vpack.c.b16 %v981, %v977
    %v1186 = vpack.c.b16 %v986, %v982
    %v1187 = vpack.c.b16 %v987, %v983
    %v1188 = vpack.c.b16 %v988, %v984
    %v1189 = vpack.c.b16 %v989, %v985
    %v1190 = vpack.c.b16 %v994, %v990
    %v1191 = vpack.c.b16 %v995, %v991
    %v1192 = vpack.c.b16 %v996, %v992
    %v1193 = vpack.c.b16 %v997, %v993
    %vm1390 = vcmask 130048
    %v1392 = vsel %vm1390, %v122, 0
    %1394 = vmatpush.bf16.msra.mxu0 %v1026
    %1395 = vmatpush.bf16.msra.mxu0 %v1022
    %1396 = vmatpush.bf16.msra.mxu0 %v1018
    %1397 = vmatpush.bf16.msra.mxu0 %v1014
    %1398 = vmatpush.bf16.msra.mxu0 %v1010
    %1399 = vmatpush.bf16.msra.mxu0 %v1006
    %1400 = vmatpush.bf16.msra.mxu0 %v1002
    %1401 = vmatpush.bf16.msra.mxu0 %v998
    %1402 = vmatmul.bf16.gmra.mxu0 %v116
    %v1403 = vpop.f32.mrf.mxu0
    %v1404 = vadd.f32 %v368, %v1403
    %v1405 = vpop.f32.mrf.mxu0
    %1406 = vdwg.mxu0
    %1407 = vmatpush.bf16.msra.mxu0 %v1058
    %1408 = vmatpush.bf16.msra.mxu0 %v1054
    %1409 = vmatpush.bf16.msra.mxu0 %v1050
    %1410 = vmatpush.bf16.msra.mxu0 %v1046
    %1411 = vmatpush.bf16.msra.mxu0 %v1042
    %1412 = vmatpush.bf16.msra.mxu0 %v1038
    %1413 = vmatpush.bf16.msra.mxu0 %v1034
    %1414 = vmatpush.bf16.msra.mxu0 %v1030
    %1415 = vmatmul.bf16.gmra.mxu0 %v117
    %v1416 = vpop.f32.mrf.mxu0
    %v1417 = vadd.f32 %v1404, %v1416
    %v1418 = vpop.f32.mrf.mxu0
    %1419 = vdwg.mxu0
    %1420 = vmatpush.bf16.msra.mxu0 %v1090
    %1421 = vmatpush.bf16.msra.mxu0 %v1086
    %1422 = vmatpush.bf16.msra.mxu0 %v1082
    %1423 = vmatpush.bf16.msra.mxu0 %v1078
    %1424 = vmatpush.bf16.msra.mxu0 %v1074
    %1425 = vmatpush.bf16.msra.mxu0 %v1070
    %1426 = vmatpush.bf16.msra.mxu0 %v1066
    %1427 = vmatpush.bf16.msra.mxu0 %v1062
    %1428 = vmatmul.bf16.gmra.mxu0 %v118
    %v1429 = vpop.f32.mrf.mxu0
    %v1430 = vadd.f32 %v1417, %v1429
    %v1431 = vpop.f32.mrf.mxu0
    %1432 = vdwg.mxu0
    %1433 = vmatpush.bf16.msra.mxu0 %v1122
    %1434 = vmatpush.bf16.msra.mxu0 %v1118
    %1435 = vmatpush.bf16.msra.mxu0 %v1114
    %1436 = vmatpush.bf16.msra.mxu0 %v1110
    %1437 = vmatpush.bf16.msra.mxu0 %v1106
    %1438 = vmatpush.bf16.msra.mxu0 %v1102
    %1439 = vmatpush.bf16.msra.mxu0 %v1098
    %1440 = vmatpush.bf16.msra.mxu0 %v1094
    %1441 = vmatmul.bf16.gmra.mxu0 %v119
    %v1442 = vpop.f32.mrf.mxu0
    %v1443 = vadd.f32 %v1430, %v1442
    %v1444 = vpop.f32.mrf.mxu0
    %1445 = vdwg.mxu0
    %1446 = vmatpush.bf16.msra.mxu0 %v1154
    %1447 = vmatpush.bf16.msra.mxu0 %v1150
    %1448 = vmatpush.bf16.msra.mxu0 %v1146
    %1449 = vmatpush.bf16.msra.mxu0 %v1142
    %1450 = vmatpush.bf16.msra.mxu0 %v1138
    %1451 = vmatpush.bf16.msra.mxu0 %v1134
    %1452 = vmatpush.bf16.msra.mxu0 %v1130
    %1453 = vmatpush.bf16.msra.mxu0 %v1126
    %1454 = vmatmul.bf16.gmra.mxu0 %v120
    %v1455 = vpop.f32.mrf.mxu0
    %v1456 = vadd.f32 %v1443, %v1455
    %v1457 = vpop.f32.mrf.mxu0
    %1458 = vdwg.mxu0
    %1459 = vmatpush.bf16.msra.mxu0 %v1186
    %1460 = vmatpush.bf16.msra.mxu0 %v1182
    %1461 = vmatpush.bf16.msra.mxu0 %v1178
    %1462 = vmatpush.bf16.msra.mxu0 %v1174
    %1463 = vmatpush.bf16.msra.mxu0 %v1170
    %1464 = vmatpush.bf16.msra.mxu0 %v1166
    %1465 = vmatpush.bf16.msra.mxu0 %v1162
    %1466 = vmatpush.bf16.msra.mxu0 %v1158
    %1467 = vmatmul.bf16.gmra.mxu0 %v121
    %v1468 = vpop.f32.mrf.mxu0
    %v1469 = vadd.f32 %v1456, %v1468
    %v1470 = vpop.f32.mrf.mxu0
    %1471 = vdwg.mxu0
    %1472 = vmatpush.bf16.msra.mxu0 0
    %1473 = vmatpush.bf16.msra.mxu0 0
    %1474 = vmatpush.bf16.msra.mxu0 0
    %1475 = vmatpush.bf16.msra.mxu0 0
    %1476 = vmatpush.bf16.msra.mxu0 0
    %1477 = vmatpush.bf16.msra.mxu0 0
    %1478 = vmatpush.bf16.msra.mxu0 0
    %1479 = vmatpush.bf16.msra.mxu0 %v1190
    %1480 = vmatmul.bf16.gmra.mxu0 %v1392
    %v1481 = vpop.f32.mrf.mxu0
    %v1482 = vadd.f32 %v1469, %v1481
    %v1483 = vpop.f32.mrf.mxu0
    %1484 = vdwg.mxu0
    %1485 = vmatpush.bf16.msra.mxu0 %v1027
    %1486 = vmatpush.bf16.msra.mxu0 %v1023
    %1487 = vmatpush.bf16.msra.mxu0 %v1019
    %1488 = vmatpush.bf16.msra.mxu0 %v1015
    %1489 = vmatpush.bf16.msra.mxu0 %v1011
    %1490 = vmatpush.bf16.msra.mxu0 %v1007
    %1491 = vmatpush.bf16.msra.mxu0 %v1003
    %1492 = vmatpush.bf16.msra.mxu0 %v999
    %1493 = vmatmul.bf16.gmra.mxu0 %v116
    %v1494 = vpop.f32.mrf.mxu0
    %v1495 = vadd.f32 %v381, %v1494
    %v1496 = vpop.f32.mrf.mxu0
    %1497 = vdwg.mxu0
    %1498 = vmatpush.bf16.msra.mxu0 %v1059
    %1499 = vmatpush.bf16.msra.mxu0 %v1055
    %1500 = vmatpush.bf16.msra.mxu0 %v1051
    %1501 = vmatpush.bf16.msra.mxu0 %v1047
    %1502 = vmatpush.bf16.msra.mxu0 %v1043
    %1503 = vmatpush.bf16.msra.mxu0 %v1039
    %1504 = vmatpush.bf16.msra.mxu0 %v1035
    %1505 = vmatpush.bf16.msra.mxu0 %v1031
    %1506 = vmatmul.bf16.gmra.mxu0 %v117
    %v1507 = vpop.f32.mrf.mxu0
    %v1508 = vadd.f32 %v1495, %v1507
    %v1509 = vpop.f32.mrf.mxu0
    %1510 = vdwg.mxu0
    %1511 = vmatpush.bf16.msra.mxu0 %v1091
    %1512 = vmatpush.bf16.msra.mxu0 %v1087
    %1513 = vmatpush.bf16.msra.mxu0 %v1083
    %1514 = vmatpush.bf16.msra.mxu0 %v1079
    %1515 = vmatpush.bf16.msra.mxu0 %v1075
    %1516 = vmatpush.bf16.msra.mxu0 %v1071
    %1517 = vmatpush.bf16.msra.mxu0 %v1067
    %1518 = vmatpush.bf16.msra.mxu0 %v1063
    %1519 = vmatmul.bf16.gmra.mxu0 %v118
    %v1520 = vpop.f32.mrf.mxu0
    %v1521 = vadd.f32 %v1508, %v1520
    %v1522 = vpop.f32.mrf.mxu0
    %1523 = vdwg.mxu0
    %1524 = vmatpush.bf16.msra.mxu0 %v1123
    %1525 = vmatpush.bf16.msra.mxu0 %v1119
    %1526 = vmatpush.bf16.msra.mxu0 %v1115
    %1527 = vmatpush.bf16.msra.mxu0 %v1111
    %1528 = vmatpush.bf16.msra.mxu0 %v1107
    %1529 = vmatpush.bf16.msra.mxu0 %v1103
    %1530 = vmatpush.bf16.msra.mxu0 %v1099
    %1531 = vmatpush.bf16.msra.mxu0 %v1095
    %1532 = vmatmul.bf16.gmra.mxu0 %v119
    %v1533 = vpop.f32.mrf.mxu0
    %v1534 = vadd.f32 %v1521, %v1533
    %v1535 = vpop.f32.mrf.mxu0
    %1536 = vdwg.mxu0
    %1537 = vmatpush.bf16.msra.mxu0 %v1155
    %1538 = vmatpush.bf16.msra.mxu0 %v1151
    %1539 = vmatpush.bf16.msra.mxu0 %v1147
    %1540 = vmatpush.bf16.msra.mxu0 %v1143
    %1541 = vmatpush.bf16.msra.mxu0 %v1139
    %1542 = vmatpush.bf16.msra.mxu0 %v1135
    %1543 = vmatpush.bf16.msra.mxu0 %v1131
    %1544 = vmatpush.bf16.msra.mxu0 %v1127
    %1545 = vmatmul.bf16.gmra.mxu0 %v120
    %v1546 = vpop.f32.mrf.mxu0
    %v1547 = vadd.f32 %v1534, %v1546
    %v1548 = vpop.f32.mrf.mxu0
    %1549 = vdwg.mxu0
    %1550 = vmatpush.bf16.msra.mxu0 %v1187
    %1551 = vmatpush.bf16.msra.mxu0 %v1183
    %1552 = vmatpush.bf16.msra.mxu0 %v1179
    %1553 = vmatpush.bf16.msra.mxu0 %v1175
    %1554 = vmatpush.bf16.msra.mxu0 %v1171
    %1555 = vmatpush.bf16.msra.mxu0 %v1167
    %1556 = vmatpush.bf16.msra.mxu0 %v1163
    %1557 = vmatpush.bf16.msra.mxu0 %v1159
    %1558 = vmatmul.bf16.gmra.mxu0 %v121
    %v1559 = vpop.f32.mrf.mxu0
    %v1560 = vadd.f32 %v1547, %v1559
    %v1561 = vpop.f32.mrf.mxu0
    %1562 = vdwg.mxu0
    %1563 = vmatpush.bf16.msra.mxu0 0
    %1564 = vmatpush.bf16.msra.mxu0 0
    %1565 = vmatpush.bf16.msra.mxu0 0
    %1566 = vmatpush.bf16.msra.mxu0 0
    %1567 = vmatpush.bf16.msra.mxu0 0
    %1568 = vmatpush.bf16.msra.mxu0 0
    %1569 = vmatpush.bf16.msra.mxu0 0
    %1570 = vmatpush.bf16.msra.mxu0 %v1191
    %1571 = vmatmul.bf16.gmra.mxu0 %v1392
    %v1572 = vpop.f32.mrf.mxu0
    %v1573 = vadd.f32 %v1560, %v1572
    %v1574 = vpop.f32.mrf.mxu0
    %1575 = vdwg.mxu0
    %1576 = vmatpush.bf16.msra.mxu0 %v1028
    %1577 = vmatpush.bf16.msra.mxu0 %v1024
    %1578 = vmatpush.bf16.msra.mxu0 %v1020
    %1579 = vmatpush.bf16.msra.mxu0 %v1016
    %1580 = vmatpush.bf16.msra.mxu0 %v1012
    %1581 = vmatpush.bf16.msra.mxu0 %v1008
    %1582 = vmatpush.bf16.msra.mxu0 %v1004
    %1583 = vmatpush.bf16.msra.mxu0 %v1000
    %1584 = vmatmul.bf16.gmra.mxu0 %v116
    %v1585 = vpop.f32.mrf.mxu0
    %v1586 = vadd.f32 %v394, %v1585
    %v1587 = vpop.f32.mrf.mxu0
    %1588 = vdwg.mxu0
    %1589 = vmatpush.bf16.msra.mxu0 %v1060
    %1590 = vmatpush.bf16.msra.mxu0 %v1056
    %1591 = vmatpush.bf16.msra.mxu0 %v1052
    %1592 = vmatpush.bf16.msra.mxu0 %v1048
    %1593 = vmatpush.bf16.msra.mxu0 %v1044
    %1594 = vmatpush.bf16.msra.mxu0 %v1040
    %1595 = vmatpush.bf16.msra.mxu0 %v1036
    %1596 = vmatpush.bf16.msra.mxu0 %v1032
    %1597 = vmatmul.bf16.gmra.mxu0 %v117
    %v1598 = vpop.f32.mrf.mxu0
    %v1599 = vadd.f32 %v1586, %v1598
    %v1600 = vpop.f32.mrf.mxu0
    %1601 = vdwg.mxu0
    %1602 = vmatpush.bf16.msra.mxu0 %v1092
    %1603 = vmatpush.bf16.msra.mxu0 %v1088
    %1604 = vmatpush.bf16.msra.mxu0 %v1084
    %1605 = vmatpush.bf16.msra.mxu0 %v1080
    %1606 = vmatpush.bf16.msra.mxu0 %v1076
    %1607 = vmatpush.bf16.msra.mxu0 %v1072
    %1608 = vmatpush.bf16.msra.mxu0 %v1068
    %1609 = vmatpush.bf16.msra.mxu0 %v1064
    %1610 = vmatmul.bf16.gmra.mxu0 %v118
    %v1611 = vpop.f32.mrf.mxu0
    %v1612 = vadd.f32 %v1599, %v1611
    %v1613 = vpop.f32.mrf.mxu0
    %1614 = vdwg.mxu0
    %1615 = vmatpush.bf16.msra.mxu0 %v1124
    %1616 = vmatpush.bf16.msra.mxu0 %v1120
    %1617 = vmatpush.bf16.msra.mxu0 %v1116
    %1618 = vmatpush.bf16.msra.mxu0 %v1112
    %1619 = vmatpush.bf16.msra.mxu0 %v1108
    %1620 = vmatpush.bf16.msra.mxu0 %v1104
    %1621 = vmatpush.bf16.msra.mxu0 %v1100
    %1622 = vmatpush.bf16.msra.mxu0 %v1096
    %1623 = vmatmul.bf16.gmra.mxu0 %v119
    %v1624 = vpop.f32.mrf.mxu0
    %v1625 = vadd.f32 %v1612, %v1624
    %v1626 = vpop.f32.mrf.mxu0
    %1627 = vdwg.mxu0
    %1628 = vmatpush.bf16.msra.mxu0 %v1156
    %1629 = vmatpush.bf16.msra.mxu0 %v1152
    %1630 = vmatpush.bf16.msra.mxu0 %v1148
    %1631 = vmatpush.bf16.msra.mxu0 %v1144
    %1632 = vmatpush.bf16.msra.mxu0 %v1140
    %1633 = vmatpush.bf16.msra.mxu0 %v1136
    %1634 = vmatpush.bf16.msra.mxu0 %v1132
    %1635 = vmatpush.bf16.msra.mxu0 %v1128
    %1636 = vmatmul.bf16.gmra.mxu0 %v120
    %v1637 = vpop.f32.mrf.mxu0
    %v1638 = vadd.f32 %v1625, %v1637
    %v1639 = vpop.f32.mrf.mxu0
    %1640 = vdwg.mxu0
    %1641 = vmatpush.bf16.msra.mxu0 %v1188
    %1642 = vmatpush.bf16.msra.mxu0 %v1184
    %1643 = vmatpush.bf16.msra.mxu0 %v1180
    %1644 = vmatpush.bf16.msra.mxu0 %v1176
    %1645 = vmatpush.bf16.msra.mxu0 %v1172
    %1646 = vmatpush.bf16.msra.mxu0 %v1168
    %1647 = vmatpush.bf16.msra.mxu0 %v1164
    %1648 = vmatpush.bf16.msra.mxu0 %v1160
    %1649 = vmatmul.bf16.gmra.mxu0 %v121
    %v1650 = vpop.f32.mrf.mxu0
    %v1651 = vadd.f32 %v1638, %v1650
    %v1652 = vpop.f32.mrf.mxu0
    %1653 = vdwg.mxu0
    %1654 = vmatpush.bf16.msra.mxu0 0
    %1655 = vmatpush.bf16.msra.mxu0 0
    %1656 = vmatpush.bf16.msra.mxu0 0
    %1657 = vmatpush.bf16.msra.mxu0 0
    %1658 = vmatpush.bf16.msra.mxu0 0
    %1659 = vmatpush.bf16.msra.mxu0 0
    %1660 = vmatpush.bf16.msra.mxu0 0
    %1661 = vmatpush.bf16.msra.mxu0 %v1192
    %1662 = vmatmul.bf16.gmra.mxu0 %v1392
    %v1663 = vpop.f32.mrf.mxu0
    %v1664 = vadd.f32 %v1651, %v1663
    %v1665 = vpop.f32.mrf.mxu0
    %1666 = vdwg.mxu0
    %1667 = vmatpush.bf16.msra.mxu0 %v1029
    %1668 = vmatpush.bf16.msra.mxu0 %v1025
    %1669 = vmatpush.bf16.msra.mxu0 %v1021
    %1670 = vmatpush.bf16.msra.mxu0 %v1017
    %1671 = vmatpush.bf16.msra.mxu0 %v1013
    %1672 = vmatpush.bf16.msra.mxu0 %v1009
    %1673 = vmatpush.bf16.msra.mxu0 %v1005
    %1674 = vmatpush.bf16.msra.mxu0 %v1001
    %1675 = vmatmul.bf16.gmra.mxu0 %v116
    %v1676 = vpop.f32.mrf.mxu0
    %v1677 = vadd.f32 %v407, %v1676
    %v1678 = vpop.f32.mrf.mxu0
    %1679 = vdwg.mxu0
    %1680 = vmatpush.bf16.msra.mxu0 %v1061
    %1681 = vmatpush.bf16.msra.mxu0 %v1057
    %1682 = vmatpush.bf16.msra.mxu0 %v1053
    %1683 = vmatpush.bf16.msra.mxu0 %v1049
    %1684 = vmatpush.bf16.msra.mxu0 %v1045
    %1685 = vmatpush.bf16.msra.mxu0 %v1041
    %1686 = vmatpush.bf16.msra.mxu0 %v1037
    %1687 = vmatpush.bf16.msra.mxu0 %v1033
    %1688 = vmatmul.bf16.gmra.mxu0 %v117
    %v1689 = vpop.f32.mrf.mxu0
    %v1690 = vadd.f32 %v1677, %v1689
    %v1691 = vpop.f32.mrf.mxu0
    %1692 = vdwg.mxu0
    %1693 = vmatpush.bf16.msra.mxu0 %v1093
    %1694 = vmatpush.bf16.msra.mxu0 %v1089
    %1695 = vmatpush.bf16.msra.mxu0 %v1085
    %1696 = vmatpush.bf16.msra.mxu0 %v1081
    %1697 = vmatpush.bf16.msra.mxu0 %v1077
    %1698 = vmatpush.bf16.msra.mxu0 %v1073
    %1699 = vmatpush.bf16.msra.mxu0 %v1069
    %1700 = vmatpush.bf16.msra.mxu0 %v1065
    %1701 = vmatmul.bf16.gmra.mxu0 %v118
    %v1702 = vpop.f32.mrf.mxu0
    %v1703 = vadd.f32 %v1690, %v1702
    %v1704 = vpop.f32.mrf.mxu0
    %1705 = vdwg.mxu0
    %1706 = vmatpush.bf16.msra.mxu0 %v1125
    %1707 = vmatpush.bf16.msra.mxu0 %v1121
    %1708 = vmatpush.bf16.msra.mxu0 %v1117
    %1709 = vmatpush.bf16.msra.mxu0 %v1113
    %1710 = vmatpush.bf16.msra.mxu0 %v1109
    %1711 = vmatpush.bf16.msra.mxu0 %v1105
    %1712 = vmatpush.bf16.msra.mxu0 %v1101
    %1713 = vmatpush.bf16.msra.mxu0 %v1097
    %1714 = vmatmul.bf16.gmra.mxu0 %v119
    %v1715 = vpop.f32.mrf.mxu0
    %v1716 = vadd.f32 %v1703, %v1715
    %v1717 = vpop.f32.mrf.mxu0
    %1718 = vdwg.mxu0
    %1719 = vmatpush.bf16.msra.mxu0 %v1157
    %1720 = vmatpush.bf16.msra.mxu0 %v1153
    %1721 = vmatpush.bf16.msra.mxu0 %v1149
    %1722 = vmatpush.bf16.msra.mxu0 %v1145
    %1723 = vmatpush.bf16.msra.mxu0 %v1141
    %1724 = vmatpush.bf16.msra.mxu0 %v1137
    %1725 = vmatpush.bf16.msra.mxu0 %v1133
    %1726 = vmatpush.bf16.msra.mxu0 %v1129
    %1727 = vmatmul.bf16.gmra.mxu0 %v120
    %v1728 = vpop.f32.mrf.mxu0
    %v1729 = vadd.f32 %v1716, %v1728
    %v1730 = vpop.f32.mrf.mxu0
    %1731 = vdwg.mxu0
    %1732 = vmatpush.bf16.msra.mxu0 %v1189
    %1733 = vmatpush.bf16.msra.mxu0 %v1185
    %1734 = vmatpush.bf16.msra.mxu0 %v1181
    %1735 = vmatpush.bf16.msra.mxu0 %v1177
    %1736 = vmatpush.bf16.msra.mxu0 %v1173
    %1737 = vmatpush.bf16.msra.mxu0 %v1169
    %1738 = vmatpush.bf16.msra.mxu0 %v1165
    %1739 = vmatpush.bf16.msra.mxu0 %v1161
    %1740 = vmatmul.bf16.gmra.mxu0 %v121
    %v1741 = vpop.f32.mrf.mxu0
    %v1742 = vadd.f32 %v1729, %v1741
    %v1743 = vpop.f32.mrf.mxu0
    %1744 = vdwg.mxu0
    %1745 = vmatpush.bf16.msra.mxu0 0
    %1746 = vmatpush.bf16.msra.mxu0 0
    %1747 = vmatpush.bf16.msra.mxu0 0
    %1748 = vmatpush.bf16.msra.mxu0 0
    %1749 = vmatpush.bf16.msra.mxu0 0
    %1750 = vmatpush.bf16.msra.mxu0 0
    %1751 = vmatpush.bf16.msra.mxu0 0
    %1752 = vmatpush.bf16.msra.mxu0 %v1193
    %1753 = vmatmul.bf16.gmra.mxu0 %v1392
    %v1754 = vpop.f32.mrf.mxu0
    %v1755 = vadd.f32 %v1742, %v1754
    %v1756 = vpop.f32.mrf.mxu0
    %1757 = vdwg.mxu0
    %v1758 = vld [vmem:[%s4] sm:$0xf]
    %v1760 = vperm.slane %v1758, 0
    %v1761 = vperm.slane %v1758, 1
    %v1762 = vperm.slane %v1758, 2
    %v1763 = vperm.slane %v1758, 3
    %v1768 = vadd.f32 %v1482, %v1760
    %v1769 = vadd.f32 %v1573, %v1761
    %v1770 = vadd.f32 %v1664, %v1762
    %v1771 = vadd.f32 %v1755, %v1763
    %v1772 = vmul.f32 %v1768, 0.2
    %v1773 = vmul.f32 %v1769, 0.2
    %v1774 = vmul.f32 %v1770, 0.2
    %v1775 = vmul.f32 %v1771, 0.2
    %v1776 = vmax.f32 %v1768, %v1772
    %v1777 = vmax.f32 %v1769, %v1773
    %v1778 = vmax.f32 %v1770, %v1774
    %v1779 = vmax.f32 %v1771, %v1775
    %v1780 = vpack.c.bf16 %v1776, %v1776
    %v1781 = vpack.c.bf16 %v1777, %v1777
    %v1782 = vpack.c.bf16 %v1778, %v1778
    %v1783 = vpack.c.bf16 %v1779, %v1779
    %v1784 = vld [vmem:[#allocation10] sm:$0xff]
    %v1785 = vld [vmem:[#allocation10 + $0x8] sm:$0xff]
    %v1786 = vld [vmem:[#allocation10 + $0x10] sm:$0xff]
    %v1787 = vld [vmem:[#allocation10 + $0x18] sm:$0xff]
    %v1788 = vld [vmem:[#allocation10 + $0x20] sm:$0xff]
    %v1789 = vld [vmem:[#allocation10 + $0x28] sm:$0xff]
    %v1790 = vld [vmem:[#allocation10 + $0x30] sm:$0xff]
    %v1791 = vld [vmem:[#allocation10 + $0x38] sm:$0xff]
    %v1792 = vld [vmem:[#allocation10 + $0x40] sm:$0xff]
    %v1793 = vld [vmem:[#allocation10 + $0x48] sm:$0xff]
    %v1794 = vld [vmem:[#allocation10 + $0x50] sm:$0xff]
    %v1795 = vld [vmem:[#allocation10 + $0x58] sm:$0xff]
    %v1796 = vld [vmem:[#allocation10 + $0x60] sm:$0xff]
    %v1797 = vld [vmem:[#allocation10 + $0x68] sm:$0xff]
    %v1798 = vld [vmem:[#allocation10 + $0x70] sm:$0xff]
    %v1799 = vld [vmem:[#allocation10 + $0x78] sm:$0xff]
    %v1800 = vld [vmem:[#allocation10 + $0x80] sm:$0xff]
    %v1801 = vld [vmem:[#allocation10 + $0x88] sm:$0xff]
    %v1802 = vld [vmem:[#allocation10 + $0x90] sm:$0xff]
    %v1803 = vld [vmem:[#allocation10 + $0x98] sm:$0xff]
    %v1804 = vld [vmem:[#allocation10 + $0xa0] sm:$0xff]
    %v1805 = vld [vmem:[#allocation10 + $0xa8] sm:$0xff]
    %v1806 = vld [vmem:[#allocation10 + $0xb0] sm:$0xff]
    %v1807 = vld [vmem:[#allocation10 + $0xb8] sm:$0xff]
    %v1808 = vld [vmem:[#allocation10 + $0xc0] sm:$0xff]
    %v1809 = vld [vmem:[#allocation10 + $0xc8] sm:$0xff]
    %v1810 = vld [vmem:[#allocation10 + $0xd0] sm:$0xff]
    %v1811 = vld [vmem:[#allocation10 + $0xd8] sm:$0xff]
    %v1812 = vld [vmem:[#allocation10 + $0xe0] sm:$0xff]
    %v1813 = vld [vmem:[#allocation10 + $0xe8] sm:$0xff]
    %v1814 = vld [vmem:[#allocation10 + $0xf0] sm:$0xff]
    %v1815 = vld [vmem:[#allocation10 + $0xf8] sm:$0xff]
    %v1816 = vld [vmem:[#allocation10 + $0x100] sm:$0xff]
    %v1817 = vld [vmem:[#allocation10 + $0x108] sm:$0xff]
    %v1818 = vld [vmem:[#allocation10 + $0x110] sm:$0xff]
    %v1819 = vld [vmem:[#allocation10 + $0x118] sm:$0xff]
    %v1820 = vld [vmem:[#allocation10 + $0x120] sm:$0xff]
    %v1821 = vld [vmem:[#allocation10 + $0x128] sm:$0xff]
    %v1822 = vld [vmem:[#allocation10 + $0x130] sm:$0xff]
    %v1823 = vld [vmem:[#allocation10 + $0x138] sm:$0xff]
    %v1824 = vld [vmem:[#allocation10 + $0x140] sm:$0xff]
    %v1825 = vld [vmem:[#allocation10 + $0x148] sm:$0xff]
    %v1826 = vld [vmem:[#allocation10 + $0x150] sm:$0xff]
    %v1827 = vld [vmem:[#allocation10 + $0x158] sm:$0xff]
    %v1828 = vld [vmem:[#allocation10 + $0x160] sm:$0xff]
    %v1829 = vld [vmem:[#allocation10 + $0x168] sm:$0xff]
    %v1830 = vld [vmem:[#allocation10 + $0x170] sm:$0xff]
    %v1831 = vld [vmem:[#allocation10 + $0x178] sm:$0xff]
    %v1832 = vld [vmem:[#allocation10 + $0x180] sm:$0xff]
    %v1833 = vld [vmem:[#allocation10 + $0x188] sm:$0xff]
    %v1834 = vld [vmem:[#allocation10 + $0x190] sm:$0xff]
    %v1835 = vld [vmem:[#allocation10 + $0x198] sm:$0xff]
    %v1836 = vld [vmem:[#allocation10 + $0x1a0] sm:$0xff]
    %v1837 = vld [vmem:[#allocation10 + $0x1a8] sm:$0xff]
    %v1838 = vld [vmem:[#allocation10 + $0x1b0] sm:$0xff]
    %v1839 = vld [vmem:[#allocation10 + $0x1b8] sm:$0xff]
    %v1840 = vld [vmem:[#allocation10 + $0x1c0] sm:$0xff]
    %v1841 = vld [vmem:[#allocation10 + $0x1c8] sm:$0xff]
    %v1842 = vld [vmem:[#allocation10 + $0x1d0] sm:$0xff]
    %v1843 = vld [vmem:[#allocation10 + $0x1d8] sm:$0xff]
    %v1844 = vld [vmem:[#allocation10 + $0x1e0] sm:$0xff]
    %v1845 = vld [vmem:[#allocation10 + $0x1e8] sm:$0xff]
    %v1846 = vld [vmem:[#allocation10 + $0x1f0] sm:$0xff]
    %v1847 = vld [vmem:[#allocation10 + $0x1f8] sm:$0xff]
    %v1848 = vld [vmem:[%s6] sm:$0x3]
    %v1850 = vperm.slane %v1848, 0
    %v1851 = vperm.slane %v1848, 1
    %v1918 = vunpack.c.l.b16 %v1784
    %v1919 = vunpack.c.h.b16 %v1784
    %v1920 = vunpack.c.l.b16 %v1785
    %v1921 = vunpack.c.h.b16 %v1785
    %v1922 = vunpack.c.l.b16 %v1786
    %v1923 = vunpack.c.h.b16 %v1786
    %v1924 = vunpack.c.l.b16 %v1787
    %v1925 = vunpack.c.h.b16 %v1787
    %v1926 = vunpack.c.l.b16 %v1788
    %v1927 = vunpack.c.h.b16 %v1788
    %v1928 = vunpack.c.l.b16 %v1789
    %v1929 = vunpack.c.h.b16 %v1789
    %v1930 = vunpack.c.l.b16 %v1790
    %v1931 = vunpack.c.h.b16 %v1790
    %v1932 = vunpack.c.l.b16 %v1791
    %v1933 = vunpack.c.h.b16 %v1791
    %v1934 = vunpack.c.l.b16 %v1792
    %v1935 = vunpack.c.h.b16 %v1792
    %v1936 = vunpack.c.l.b16 %v1793
    %v1937 = vunpack.c.h.b16 %v1793
    %v1938 = vunpack.c.l.b16 %v1794
    %v1939 = vunpack.c.h.b16 %v1794
    %v1940 = vunpack.c.l.b16 %v1795
    %v1941 = vunpack.c.h.b16 %v1795
    %v1942 = vunpack.c.l.b16 %v1796
    %v1943 = vunpack.c.h.b16 %v1796
    %v1944 = vunpack.c.l.b16 %v1797
    %v1945 = vunpack.c.h.b16 %v1797
    %v1946 = vunpack.c.l.b16 %v1798
    %v1947 = vunpack.c.h.b16 %v1798
    %v1948 = vunpack.c.l.b16 %v1799
    %v1949 = vunpack.c.h.b16 %v1799
    %v1950 = vunpack.c.l.b16 %v1800
    %v1951 = vunpack.c.h.b16 %v1800
    %v1952 = vunpack.c.l.b16 %v1801
    %v1953 = vunpack.c.h.b16 %v1801
    %v1954 = vunpack.c.l.b16 %v1802
    %v1955 = vunpack.c.h.b16 %v1802
    %v1956 = vunpack.c.l.b16 %v1803
    %v1957 = vunpack.c.h.b16 %v1803
    %v1958 = vunpack.c.l.b16 %v1804
    %v1959 = vunpack.c.h.b16 %v1804
    %v1960 = vunpack.c.l.b16 %v1805
    %v1961 = vunpack.c.h.b16 %v1805
    %v1962 = vunpack.c.l.b16 %v1806
    %v1963 = vunpack.c.h.b16 %v1806
    %v1964 = vunpack.c.l.b16 %v1807
    %v1965 = vunpack.c.h.b16 %v1807
    %v1966 = vunpack.c.l.b16 %v1808
    %v1967 = vunpack.c.h.b16 %v1808
    %v1968 = vunpack.c.l.b16 %v1809
    %v1969 = vunpack.c.h.b16 %v1809
    %v1970 = vunpack.c.l.b16 %v1810
    %v1971 = vunpack.c.h.b16 %v1810
    %v1972 = vunpack.c.l.b16 %v1811
    %v1973 = vunpack.c.h.b16 %v1811
    %v1974 = vunpack.c.l.b16 %v1812
    %v1975 = vunpack.c.h.b16 %v1812
    %v1976 = vunpack.c.l.b16 %v1813
    %v1977 = vunpack.c.h.b16 %v1813
    %v1978 = vunpack.c.l.b16 %v1814
    %v1979 = vunpack.c.h.b16 %v1814
    %v1980 = vunpack.c.l.b16 %v1815
    %v1981 = vunpack.c.h.b16 %v1815
    %v1982 = vunpack.c.l.b16 %v1816
    %v1983 = vunpack.c.h.b16 %v1816
    %v1984 = vunpack.c.l.b16 %v1817
    %v1985 = vunpack.c.h.b16 %v1817
    %v1986 = vunpack.c.l.b16 %v1818
    %v1987 = vunpack.c.h.b16 %v1818
    %v1988 = vunpack.c.l.b16 %v1819
    %v1989 = vunpack.c.h.b16 %v1819
    %v1990 = vunpack.c.l.b16 %v1820
    %v1991 = vunpack.c.h.b16 %v1820
    %v1992 = vunpack.c.l.b16 %v1821
    %v1993 = vunpack.c.h.b16 %v1821
    %v1994 = vunpack.c.l.b16 %v1822
    %v1995 = vunpack.c.h.b16 %v1822
    %v1996 = vunpack.c.l.b16 %v1823
    %v1997 = vunpack.c.h.b16 %v1823
    %v1998 = vunpack.c.l.b16 %v1824
    %v1999 = vunpack.c.h.b16 %v1824
    %v2000 = vunpack.c.l.b16 %v1825
    %v2001 = vunpack.c.h.b16 %v1825
    %v2002 = vunpack.c.l.b16 %v1826
    %v2003 = vunpack.c.h.b16 %v1826
    %v2004 = vunpack.c.l.b16 %v1827
    %v2005 = vunpack.c.h.b16 %v1827
    %v2006 = vunpack.c.l.b16 %v1828
    %v2007 = vunpack.c.h.b16 %v1828
    %v2008 = vunpack.c.l.b16 %v1829
    %v2009 = vunpack.c.h.b16 %v1829
    %v2010 = vunpack.c.l.b16 %v1830
    %v2011 = vunpack.c.h.b16 %v1830
    %v2012 = vunpack.c.l.b16 %v1831
    %v2013 = vunpack.c.h.b16 %v1831
    %v2014 = vunpack.c.l.b16 %v1832
    %v2015 = vunpack.c.h.b16 %v1832
    %v2016 = vunpack.c.l.b16 %v1833
    %v2017 = vunpack.c.h.b16 %v1833
    %v2018 = vunpack.c.l.b16 %v1834
    %v2019 = vunpack.c.h.b16 %v1834
    %v2020 = vunpack.c.l.b16 %v1835
    %v2021 = vunpack.c.h.b16 %v1835
    %v2022 = vunpack.c.l.b16 %v1836
    %v2023 = vunpack.c.h.b16 %v1836
    %v2024 = vunpack.c.l.b16 %v1837
    %v2025 = vunpack.c.h.b16 %v1837
    %v2026 = vunpack.c.l.b16 %v1838
    %v2027 = vunpack.c.h.b16 %v1838
    %v2028 = vunpack.c.l.b16 %v1839
    %v2029 = vunpack.c.h.b16 %v1839
    %v2030 = vunpack.c.l.b16 %v1840
    %v2031 = vunpack.c.h.b16 %v1840
    %v2032 = vunpack.c.l.b16 %v1841
    %v2033 = vunpack.c.h.b16 %v1841
    %v2034 = vunpack.c.l.b16 %v1842
    %v2035 = vunpack.c.h.b16 %v1842
    %v2036 = vunpack.c.l.b16 %v1843
    %v2037 = vunpack.c.h.b16 %v1843
    %v2038 = vunpack.c.l.b16 %v1844
    %v2039 = vunpack.c.h.b16 %v1844
    %v2040 = vunpack.c.l.b16 %v1845
    %v2041 = vunpack.c.h.b16 %v1845
    %v2042 = vunpack.c.l.b16 %v1846
    %v2043 = vunpack.c.h.b16 %v1846
    %v2044 = vunpack.c.l.b16 %v1847
    %v2045 = vunpack.c.h.b16 %v1847
    %v2046 = vpack.c.b16 %v1920, %v1918
    %v2047 = vpack.c.b16 %v1921, %v1919
    %v2048 = vpack.c.b16 %v1924, %v1922
    %v2049 = vpack.c.b16 %v1925, %v1923
    %v2050 = vpack.c.b16 %v1928, %v1926
    %v2051 = vpack.c.b16 %v1929, %v1927
    %v2052 = vpack.c.b16 %v1932, %v1930
    %v2053 = vpack.c.b16 %v1933, %v1931
    %v2054 = vpack.c.b16 %v1936, %v1934
    %v2055 = vpack.c.b16 %v1937, %v1935
    %v2056 = vpack.c.b16 %v1940, %v1938
    %v2057 = vpack.c.b16 %v1941, %v1939
    %v2058 = vpack.c.b16 %v1944, %v1942
    %v2059 = vpack.c.b16 %v1945, %v1943
    %v2060 = vpack.c.b16 %v1948, %v1946
    %v2061 = vpack.c.b16 %v1949, %v1947
    %v2062 = vpack.c.b16 %v1952, %v1950
    %v2063 = vpack.c.b16 %v1953, %v1951
    %v2064 = vpack.c.b16 %v1956, %v1954
    %v2065 = vpack.c.b16 %v1957, %v1955
    %v2066 = vpack.c.b16 %v1960, %v1958
    %v2067 = vpack.c.b16 %v1961, %v1959
    %v2068 = vpack.c.b16 %v1964, %v1962
    %v2069 = vpack.c.b16 %v1965, %v1963
    %v2070 = vpack.c.b16 %v1968, %v1966
    %v2071 = vpack.c.b16 %v1969, %v1967
    %v2072 = vpack.c.b16 %v1972, %v1970
    %v2073 = vpack.c.b16 %v1973, %v1971
    %v2074 = vpack.c.b16 %v1976, %v1974
    %v2075 = vpack.c.b16 %v1977, %v1975
    %v2076 = vpack.c.b16 %v1980, %v1978
    %v2077 = vpack.c.b16 %v1981, %v1979
    %v2078 = vpack.c.b16 %v1984, %v1982
    %v2079 = vpack.c.b16 %v1985, %v1983
    %v2080 = vpack.c.b16 %v1988, %v1986
    %v2081 = vpack.c.b16 %v1989, %v1987
    %v2082 = vpack.c.b16 %v1992, %v1990
    %v2083 = vpack.c.b16 %v1993, %v1991
    %v2084 = vpack.c.b16 %v1996, %v1994
    %v2085 = vpack.c.b16 %v1997, %v1995
    %v2086 = vpack.c.b16 %v2000, %v1998
    %v2087 = vpack.c.b16 %v2001, %v1999
    %v2088 = vpack.c.b16 %v2004, %v2002
    %v2089 = vpack.c.b16 %v2005, %v2003
    %v2090 = vpack.c.b16 %v2008, %v2006
    %v2091 = vpack.c.b16 %v2009, %v2007
    %v2092 = vpack.c.b16 %v2012, %v2010
    %v2093 = vpack.c.b16 %v2013, %v2011
    %v2094 = vpack.c.b16 %v2016, %v2014
    %v2095 = vpack.c.b16 %v2017, %v2015
    %v2096 = vpack.c.b16 %v2020, %v2018
    %v2097 = vpack.c.b16 %v2021, %v2019
    %v2098 = vpack.c.b16 %v2024, %v2022
    %v2099 = vpack.c.b16 %v2025, %v2023
    %v2100 = vpack.c.b16 %v2028, %v2026
    %v2101 = vpack.c.b16 %v2029, %v2027
    %v2102 = vpack.c.b16 %v2032, %v2030
    %v2103 = vpack.c.b16 %v2033, %v2031
    %v2104 = vpack.c.b16 %v2036, %v2034
    %v2105 = vpack.c.b16 %v2037, %v2035
    %v2106 = vpack.c.b16 %v2040, %v2038
    %v2107 = vpack.c.b16 %v2041, %v2039
    %v2108 = vpack.c.b16 %v2044, %v2042
    %v2109 = vpack.c.b16 %v2045, %v2043
    %2174 = vmatpush.bf16.msra.mxu0 %v2060
    %2175 = vmatpush.bf16.msra.mxu0 %v2058
    %2176 = vmatpush.bf16.msra.mxu0 %v2056
    %2177 = vmatpush.bf16.msra.mxu0 %v2054
    %2178 = vmatpush.bf16.msra.mxu0 %v2052
    %2179 = vmatpush.bf16.msra.mxu0 %v2050
    %2180 = vmatpush.bf16.msra.mxu0 %v2048
    %2181 = vmatpush.bf16.msra.mxu0 %v2046
    %2182 = vmatmul.bf16.gmra.mxu0 %v1780
    %v2183 = vpop.f32.mrf.mxu0
    %v2184 = vadd.f32 %v1850, %v2183
    %v2185 = vpop.f32.mrf.mxu0
    %2186 = vdwg.mxu0
    %2187 = vmatpush.bf16.msra.mxu0 %v2076
    %2188 = vmatpush.bf16.msra.mxu0 %v2074
    %2189 = vmatpush.bf16.msra.mxu0 %v2072
    %2190 = vmatpush.bf16.msra.mxu0 %v2070
    %2191 = vmatpush.bf16.msra.mxu0 %v2068
    %2192 = vmatpush.bf16.msra.mxu0 %v2066
    %2193 = vmatpush.bf16.msra.mxu0 %v2064
    %2194 = vmatpush.bf16.msra.mxu0 %v2062
    %2195 = vmatmul.bf16.gmra.mxu0 %v1781
    %v2196 = vpop.f32.mrf.mxu0
    %v2197 = vadd.f32 %v2184, %v2196
    %v2198 = vpop.f32.mrf.mxu0
    %2199 = vdwg.mxu0
    %2200 = vmatpush.bf16.msra.mxu0 %v2092
    %2201 = vmatpush.bf16.msra.mxu0 %v2090
    %2202 = vmatpush.bf16.msra.mxu0 %v2088
    %2203 = vmatpush.bf16.msra.mxu0 %v2086
    %2204 = vmatpush.bf16.msra.mxu0 %v2084
    %2205 = vmatpush.bf16.msra.mxu0 %v2082
    %2206 = vmatpush.bf16.msra.mxu0 %v2080
    %2207 = vmatpush.bf16.msra.mxu0 %v2078
    %2208 = vmatmul.bf16.gmra.mxu0 %v1782
    %v2209 = vpop.f32.mrf.mxu0
    %v2210 = vadd.f32 %v2197, %v2209
    %v2211 = vpop.f32.mrf.mxu0
    %2212 = vdwg.mxu0
    %2213 = vmatpush.bf16.msra.mxu0 %v2108
    %2214 = vmatpush.bf16.msra.mxu0 %v2106
    %2215 = vmatpush.bf16.msra.mxu0 %v2104
    %2216 = vmatpush.bf16.msra.mxu0 %v2102
    %2217 = vmatpush.bf16.msra.mxu0 %v2100
    %2218 = vmatpush.bf16.msra.mxu0 %v2098
    %2219 = vmatpush.bf16.msra.mxu0 %v2096
    %2220 = vmatpush.bf16.msra.mxu0 %v2094
    %2221 = vmatmul.bf16.gmra.mxu0 %v1783
    %v2222 = vpop.f32.mrf.mxu0
    %v2223 = vadd.f32 %v2210, %v2222
    %v2224 = vpop.f32.mrf.mxu0
    %2225 = vdwg.mxu0
    %2226 = vmatpush.bf16.msra.mxu0 %v2061
    %2227 = vmatpush.bf16.msra.mxu0 %v2059
    %2228 = vmatpush.bf16.msra.mxu0 %v2057
    %2229 = vmatpush.bf16.msra.mxu0 %v2055
    %2230 = vmatpush.bf16.msra.mxu0 %v2053
    %2231 = vmatpush.bf16.msra.mxu0 %v2051
    %2232 = vmatpush.bf16.msra.mxu0 %v2049
    %2233 = vmatpush.bf16.msra.mxu0 %v2047
    %2234 = vmatmul.bf16.gmra.mxu0 %v1780
    %v2235 = vpop.f32.mrf.mxu0
    %v2236 = vadd.f32 %v1851, %v2235
    %v2237 = vpop.f32.mrf.mxu0
    %2238 = vdwg.mxu0
    %2239 = vmatpush.bf16.msra.mxu0 %v2077
    %2240 = vmatpush.bf16.msra.mxu0 %v2075
    %2241 = vmatpush.bf16.msra.mxu0 %v2073
    %2242 = vmatpush.bf16.msra.mxu0 %v2071
    %2243 = vmatpush.bf16.msra.mxu0 %v2069
    %2244 = vmatpush.bf16.msra.mxu0 %v2067
    %2245 = vmatpush.bf16.msra.mxu0 %v2065
    %2246 = vmatpush.bf16.msra.mxu0 %v2063
    %2247 = vmatmul.bf16.gmra.mxu0 %v1781
    %v2248 = vpop.f32.mrf.mxu0
    %v2249 = vadd.f32 %v2236, %v2248
    %v2250 = vpop.f32.mrf.mxu0
    %2251 = vdwg.mxu0
    %2252 = vmatpush.bf16.msra.mxu0 %v2093
    %2253 = vmatpush.bf16.msra.mxu0 %v2091
    %2254 = vmatpush.bf16.msra.mxu0 %v2089
    %2255 = vmatpush.bf16.msra.mxu0 %v2087
    %2256 = vmatpush.bf16.msra.mxu0 %v2085
    %2257 = vmatpush.bf16.msra.mxu0 %v2083
    %2258 = vmatpush.bf16.msra.mxu0 %v2081
    %2259 = vmatpush.bf16.msra.mxu0 %v2079
    %2260 = vmatmul.bf16.gmra.mxu0 %v1782
    %v2261 = vpop.f32.mrf.mxu0
    %v2262 = vadd.f32 %v2249, %v2261
    %v2263 = vpop.f32.mrf.mxu0
    %2264 = vdwg.mxu0
    %2265 = vmatpush.bf16.msra.mxu0 %v2109
    %2266 = vmatpush.bf16.msra.mxu0 %v2107
    %2267 = vmatpush.bf16.msra.mxu0 %v2105
    %2268 = vmatpush.bf16.msra.mxu0 %v2103
    %2269 = vmatpush.bf16.msra.mxu0 %v2101
    %2270 = vmatpush.bf16.msra.mxu0 %v2099
    %2271 = vmatpush.bf16.msra.mxu0 %v2097
    %2272 = vmatpush.bf16.msra.mxu0 %v2095
    %2273 = vmatmul.bf16.gmra.mxu0 %v1783
    %v2274 = vpop.f32.mrf.mxu0
    %v2275 = vadd.f32 %v2262, %v2274
    %v2276 = vpop.f32.mrf.mxu0
    %2277 = vdwg.mxu0
    %v2278 = vmul.f32 %v2223, 0.2
    %v2279 = vmul.f32 %v2275, 0.2
    %v2280 = vmax.f32 %v2223, %v2278
    %v2281 = vmax.f32 %v2275, %v2279
    %v2282 = vld [vmem:[%s7] sm:$0x3]
    %v2284 = vperm.slane %v2282, 0
    %v2285 = vperm.slane %v2282, 1
    %v2288 = vmul.f32 %v2280, %v2284
    %v2289 = vmul.f32 %v2281, %v2285
    %v2290 = vadd.f32 %v2288, %v2289
    %2291 = vadd.xlane.f32.xlu0 %v2290
    %v2292 = vpop.xlane.xlu0 %2291
    %v2293 = vld [vmem:[#allocation2] sm:$0x1]
    %v2295 = vperm.slane %v2293, 0
    %v2297 = vadd.f32 %v2292, %v2295
    %v2298 = vxor.u32 %v2297, 2147483648
    %v2299 = vmul.f32 %v2298, 1.442695
    %v2300 = vpow.pop %v2299
    %v2301 = vadd.f32 %v2300, 1.0
    %v2302 = vrcp.pop %v2301
    %v2303 = vmul.f32 %v2301, %v2302
    %v2304 = vsub.f32 1.0, %v2303
    %v2305 = vmul.f32 %v2302, %v2304
    %v2306 = vadd.f32 %v2302, %v2305
    %vm2307 = vweird.f32 %v2301
    %vm2308 = vweird.f32 %v2302
    %vm2309 = vmor %vm2307, %vm2308
    %v2310 = vsel %vm2309, %v2302, %v2306
    %v2311 = vand.u32 2147483647, %v2301
    %vm2312 = vcmp.eq.f32.partialorder %v2311, 8.507059e+37
    %v2313 = vand.u32 %v2301, 2147483648
    %v2314 = vor.u32 1.1754944e-38, %v2313
    %v2315 = vsel %vm2312, %v2314, %v2310
    %v2316 = vmul.f32 1.0, %v2315
    %vm2317 = vcmask 7168
    %2318 = vst.msk [vmem:[%s9] sm:$0xff] %vm2317, %v2316
    // Predicated region
    $region58: #{tpu_custom_call.1} parent=1 // pred_check
      _
    $region59: #{tpu_custom_call.1} parent=1 // pred_check_branch
      %2320 = sbr.rel (0) target = $region61
    $region60: #{tpu_custom_call.1} parent=1 // pred_region
      _
    $region61: #{tpu_custom_call.1} parent=1 // pred_fallthru
      _
    // Predicated region
    $region62: #{tpu_custom_call.1} parent=1 // pred_check
      _
    $region63: #{tpu_custom_call.1} parent=1 // pred_check_branch
      %2322 = sbr.rel (0) target = $region65
    $region64: #{tpu_custom_call.1} parent=1 // pred_region
      _
    $region65: #{tpu_custom_call.1} parent=1 // pred_fallthru
      _
    %2323 = vsyncpa [#allocation4], 1
    %2324 = vsyncpa [#allocation6], 1
    %2325 = vsyncpa [#allocation9], 1

</llo_original>
